<compile_context>
chip_gen: v7x
topology: tpu7x:2x2x1
jax: 0.10.0
libtpu: 0.0.40
codegen_flags: <defaults>
</compile_context>

<pallas_src>
import functools
import math

import jax
import jax.numpy as jnp
from jax.experimental import pallas as pl
from jax.experimental.pallas import tpu as pltpu

LANE = 128      # TPU lane width
SUBLANE = 8     # f32 sublane count
VMEM_LIMIT = 64 * 1024 * 1024


# ----------------------------------------------------------------------------
# In-kernel helpers (f32 math)
# ----------------------------------------------------------------------------
def _layer_norm(x, g, b, eps=1e-5):
    mu = jnp.mean(x, axis=-1, keepdims=True)
    var = jnp.mean((x - mu) ** 2, axis=-1, keepdims=True)
    return (x - mu) * jax.lax.rsqrt(var + eps) * g + b


def _gelu_new(x):
    # GPT-2 "gelu_new" (tanh approximation)
    return 0.5 * x * (1.0 + jnp.tanh(jnp.sqrt(2.0 / jnp.pi) * (x + 0.044715 * x ** 3)))


# ----------------------------------------------------------------------------
# Attention half of a transformer block (one batch element per grid step)
# ----------------------------------------------------------------------------
def attn_kernel(x_ref, mask_ref,
                ln1_g_ref, ln1_b_ref, w_qkv_ref, b_qkv_ref,
                w_ap_ref, b_ap_ref, out_ref, *, n_head):
    S, D = x_ref.shape
    HD = D // n_head
    scale = jnp.float32(1.0 / math.sqrt(HD))

    x = x_ref[...].astype(jnp.float32)                    # (S, D)
    key_mask = mask_ref[...] > 0.5                        # (1, S) bool, True = real token

    h1 = _layer_norm(x, ln1_g_ref[...], ln1_b_ref[...])
    qkv = jnp.dot(h1.astype(jnp.bfloat16), w_qkv_ref[...],
                  preferred_element_type=jnp.float32) + b_qkv_ref[...]

    # (S, D) -> (n_head, S, HD), one batched contraction for all heads
    # (no per-head lane-misaligned slicing / concatenate).
    def heads(sl):
        return jnp.swapaxes(sl.reshape(S, n_head, HD), 0, 1).astype(jnp.bfloat16)

    q = heads(qkv[:, 0 * D:1 * D])
    k = heads(qkv[:, 1 * D:2 * D])
    v = heads(qkv[:, 2 * D:3 * D])

    s = jnp.einsum('hqd,hkd->hqk', q, k,
                   preferred_element_type=jnp.float32) * scale   # (H, S, S)

    row = jax.lax.broadcasted_iota(jnp.int32, (S, S), 0)   # query index
    col = jax.lax.broadcasted_iota(jnp.int32, (S, S), 1)   # key index
    allow = jnp.logical_and(row >= col, key_mask)          # causal AND non-padded key
    s = jnp.where(allow[None, :, :], s, jnp.float32(-1e9))

    s = s - jnp.max(s, axis=-1, keepdims=True)
    p = jnp.exp(s)
    p = p * pl.reciprocal(jnp.sum(p, axis=-1, keepdims=True), approx=True)

    ctx = jnp.einsum('hqk,hkd->hqd', p.astype(jnp.bfloat16), v,
                     preferred_element_type=jnp.float32)         # (H, S, HD)
    ctx = jnp.swapaxes(ctx, 0, 1).reshape(S, D)

    attn = jnp.dot(ctx.astype(jnp.bfloat16), w_ap_ref[...],
                   preferred_element_type=jnp.float32) + b_ap_ref[...]
    out_ref[...] = (x + attn).astype(out_ref.dtype)


def attn_block(x, mask3d, p, n_head):
    """x: (B, S, D) float32, mask3d: (B, 1, S) float32."""
    B, S, D = x.shape
    const = lambda shape: pl.BlockSpec(shape, lambda b: (0,) * len(shape))
    return pl.pallas_call(
        functools.partial(attn_kernel, n_head=n_head),
        out_shape=jax.ShapeDtypeStruct((B, S, D), x.dtype),
        grid=(B,),
        in_specs=[
            pl.BlockSpec((None, S, D), lambda b: (b, 0, 0)),   # x (batch squeezed)
            pl.BlockSpec((None, 1, S), lambda b: (b, 0, 0)),   # attention mask
            const((1, D)), const((1, D)),                      # ln1 gamma/beta
            const((D, 3 * D)), const((1, 3 * D)),              # qkv
            const((D, D)), const((1, D)),                      # attn out proj
        ],
        out_specs=pl.BlockSpec((None, S, D), lambda b: (b, 0, 0)),
        compiler_params=pltpu.CompilerParams(
            dimension_semantics=("parallel",),
            vmem_limit_bytes=VMEM_LIMIT),
    )(x, mask3d, p["ln1_g"], p["ln1_b"], p["w_qkv"], p["b_qkv"],
      p["w_ap"], p["b_ap"])


# ----------------------------------------------------------------------------
# MLP half of a transformer block (grid over batch x sequence-tile)
# ----------------------------------------------------------------------------
def mlp_kernel(x_ref, ln2_g_ref, ln2_b_ref,
               w_fc_ref, b_fc_ref, w_mp_ref, b_mp_ref, out_ref):
    x = x_ref[...].astype(jnp.float32)                    # (TQ, D)
    h2 = _layer_norm(x, ln2_g_ref[...], ln2_b_ref[...])
    fc = jnp.dot(h2.astype(jnp.bfloat16), w_fc_ref[...],
                 preferred_element_type=jnp.float32) + b_fc_ref[...]
    fc = _gelu_new(fc)
    mlp = jnp.dot(fc.astype(jnp.bfloat16), w_mp_ref[...],
                  preferred_element_type=jnp.float32) + b_mp_ref[...]
    out_ref[...] = (x + mlp).astype(out_ref.dtype)


def mlp_block(x, p, seq_tile):
    B, S, D = x.shape
    assert S % seq_tile == 0
    const = lambda shape: pl.BlockSpec(shape, lambda b, s: (0,) * len(shape))
    return pl.pallas_call(
        mlp_kernel,
        out_shape=jax.ShapeDtypeStruct((B, S, D), x.dtype),
        grid=(B, S // seq_tile),
        in_specs=[
            pl.BlockSpec((None, seq_tile, D), lambda b, s: (b, s, 0)),
            const((1, D)), const((1, D)),                      # ln2 gamma/beta
            const((D, 4 * D)), const((1, 4 * D)),              # mlp fc
            const((4 * D, D)), const((1, D)),                  # mlp proj
        ],
        out_specs=pl.BlockSpec((None, seq_tile, D), lambda b, s: (b, s, 0)),
        compiler_params=pltpu.CompilerParams(
            dimension_semantics=("parallel", "parallel"),
            vmem_limit_bytes=VMEM_LIMIT),
    )(x, p["ln2_g"], p["ln2_b"], p["w_fc"], p["b_fc"], p["w_mp"], p["b_mp"])


# ----------------------------------------------------------------------------
# Final LayerNorm + classifier head kernel (lane-dense padded output)
# ----------------------------------------------------------------------------
def classifier_kernel(x_ref, lnf_g_ref, lnf_b_ref,
                      w1_ref, b1_ref, w2_ref, b2_ref, out_ref):
    x = x_ref[...].astype(jnp.float32)                        # (Bp, D)
    h = _layer_norm(x, lnf_g_ref[...], lnf_b_ref[...])        # GPT-2 ln_f
    h = jnp.dot(h.astype(jnp.bfloat16), w1_ref[...],
                preferred_element_type=jnp.float32) + b1_ref[...]
    h = jnp.maximum(h, 0.0)                                   # ReLU
    # Dropout(0.1): identity in eval mode
    logits = jnp.dot(h.astype(jnp.bfloat16), w2_ref[...],
                     preferred_element_type=jnp.float32) + b2_ref[...]
    out_ref[...] = logits.astype(out_ref.dtype)


def classifier_head(x, lnf_g, lnf_b, w1, b1, w2, b2):
    B, D = x.shape
    C = w2.shape[1]
    # Pad to lane-dense / sublane-dense shapes: C -> multiple of 128, B -> multiple of 8.
    Cp = ((C + LANE - 1) // LANE) * LANE
    Bp = ((B + SUBLANE - 1) // SUBLANE) * SUBLANE
    x_p = jnp.pad(x, ((0, Bp - B), (0, 0)))
    w2_p = jnp.pad(w2, ((0, 0), (0, Cp - C)))
    b2_p = jnp.pad(b2, ((0, 0), (0, Cp - C)))
    const = lambda shape: pl.BlockSpec(shape, lambda i: (0,) * len(shape))
    logits_p = pl.pallas_call(
        classifier_kernel,
        out_shape=jax.ShapeDtypeStruct((Bp, Cp), jnp.float32),
        grid=(1,),
        in_specs=[const((Bp, D)), const((1, D)), const((1, D)),
                  const((D, D)), const((1, D)), const((D, Cp)), const((1, Cp))],
        out_specs=const((Bp, Cp)),
        compiler_params=pltpu.CompilerParams(vmem_limit_bytes=VMEM_LIMIT),
    )(x_p, lnf_g, lnf_b, w1, b1, w2_p, b2_p)
    return logits_p[:B, :C]


# ----------------------------------------------------------------------------
# Full forward pass
# ----------------------------------------------------------------------------
def gpt2_sentiment_forward(params, input_ids, attention_mask, n_head):
    B, S = input_ids.shape
    # Embedding lookups (glue, plain JAX)
    h = params["wte"][input_ids] + params["wpe"][jnp.arange(S)]
    h = h.astype(jnp.float32)

    mask3d = attention_mask.astype(jnp.float32).reshape(B, 1, S)
    seq_tile = S if S <= 256 else 256
    for blk in params["blocks"]:
        h = attn_block(h, mask3d, blk, n_head)
        h = mlp_block(h, blk, seq_tile)

    # last non-padded token per sequence (attention_mask.sum(dim=1) - 1)
    last_idx = attention_mask.sum(axis=1).astype(jnp.int32) - 1
    last_tok = h[jnp.arange(B), last_idx, :]                  # (B, D), pre-ln_f

    # ln_f + classifier fused in one Pallas kernel (ln_f is per-token so this is
    # equivalent to ln_f over the whole sequence followed by gathering).
    return classifier_head(last_tok,
                           params["lnf_g"], params["lnf_b"],
                           params["w1"], params["b1"],
                           params["w2"], params["b2"])


# ----------------------------------------------------------------------------
# Deterministic parameter init (synthetic stand-in for the GPT-2 checkpoint)
# Matmul weights stored bf16 (MXU operands); biases / LN params / embeddings f32.
# ----------------------------------------------------------------------------
def init_params(key, vocab, n_pos, D, n_layer, num_classes):
    def nxt():
        nonlocal key
        key, sub = jax.random.split(key)
        return sub

    def randn(shape, dtype=jnp.bfloat16, scale=0.02):
        return (scale * jax.random.normal(nxt(), shape)).astype(dtype)

    params = {
        "wte": randn((vocab, D), jnp.float32),
        "wpe": randn((n_pos, D), jnp.float32),
        "lnf_g": jnp.ones((1, D), jnp.float32),
        "lnf_b": jnp.zeros((1, D), jnp.float32),
        "w1": randn((D, D)), "b1": jnp.zeros((1, D), jnp.float32),
        "w2": randn((D, num_classes)), "b2": jnp.zeros((1, num_classes), jnp.float32),
        "blocks": [],
    }
    for _ in range(n_layer):
        params["blocks"].append({
            "ln1_g": jnp.ones((1, D), jnp.float32),
            "ln1_b": jnp.zeros((1, D), jnp.float32),
            "w_qkv": randn((D, 3 * D)), "b_qkv": jnp.zeros((1, 3 * D), jnp.float32),
            "w_ap": randn((D, D)),      "b_ap": jnp.zeros((1, D), jnp.float32),
            "ln2_g": jnp.ones((1, D), jnp.float32),
            "ln2_b": jnp.zeros((1, D), jnp.float32),
            "w_fc": randn((D, 4 * D)),  "b_fc": jnp.zeros((1, 4 * D), jnp.float32),
            "w_mp": randn((4 * D, D)),  "b_mp": jnp.zeros((1, D), jnp.float32),
        })
    return params


if __name__ == "__main__":
    # Small GPT-2-like config: batch=2, seq=8, n_embd=32, n_head=4, n_layer=2
    B, S = 2, 8
    VOCAB, N_POS, D, N_HEAD, N_LAYER, NUM_CLASSES = 64, 16, 32, 4, 2, 2

    key = jax.random.PRNGKey(0)
    k_params, k_ids = jax.random.split(key)

    params = init_params(k_params, VOCAB, N_POS, D, N_LAYER, NUM_CLASSES)

    input_ids = jax.random.randint(k_ids, (B, S), 0, VOCAB, dtype=jnp.int32)
    lengths = jnp.array([5, 8], dtype=jnp.int32)               # second sequence unpadded
    attention_mask = (jnp.arange(S)[None, :] < lengths[:, None]).astype(jnp.int32)

    logits = gpt2_sentiment_forward(params, input_ids, attention_mask, N_HEAD)
    jax.block_until_ready(logits)
    assert logits.shape == (B, NUM_CLASSES)
    print("KERNEL_OK")
</pallas_src>

<mosaic_0001>
module attributes {stable_mosaic.version = 11 : i64} {
  func.func @attn_kernel(%arg0: i32, %arg1: memref<1x8x32xf32, #tpu.memory_space<vmem>>, %arg2: memref<1x1x8xf32, #tpu.memory_space<vmem>>, %arg3: memref<1x32xf32, #tpu.memory_space<vmem>>, %arg4: memref<1x32xf32, #tpu.memory_space<vmem>>, %arg5: memref<32x96xbf16, #tpu.memory_space<vmem>>, %arg6: memref<1x96xf32, #tpu.memory_space<vmem>>, %arg7: memref<32x32xbf16, #tpu.memory_space<vmem>>, %arg8: memref<1x32xf32, #tpu.memory_space<vmem>>, %arg9: memref<1x8x32xf32, #tpu.memory_space<vmem>>) attributes {dimension_semantics = [#tpu.dimension_semantics<parallel>], iteration_bounds = array<i64: 2>, scalar_prefetch = 0 : i64, scratch_operands = 0 : i64, tpu.core_type = #tpu.core_type<tc>, window_params = [{transform_indices = @transform_0, window_bounds = array<i64: 1, 8, 32>}, {transform_indices = @transform_1, window_bounds = array<i64: 1, 1, 8>}, {pipeline_mode = #tpu.pipeline_mode<synchronous>, transform_indices = @transform_2, window_bounds = array<i64: 1, 32>}, {pipeline_mode = #tpu.pipeline_mode<synchronous>, transform_indices = @transform_3, window_bounds = array<i64: 1, 32>}, {pipeline_mode = #tpu.pipeline_mode<synchronous>, transform_indices = @transform_4, window_bounds = array<i64: 32, 96>}, {pipeline_mode = #tpu.pipeline_mode<synchronous>, transform_indices = @transform_5, window_bounds = array<i64: 1, 96>}, {pipeline_mode = #tpu.pipeline_mode<synchronous>, transform_indices = @transform_6, window_bounds = array<i64: 32, 32>}, {pipeline_mode = #tpu.pipeline_mode<synchronous>, transform_indices = @transform_7, window_bounds = array<i64: 1, 32>}, {transform_indices = @transform_8, window_bounds = array<i64: 1, 8, 32>}]} {
    %c0 = arith.constant 0 : index
    %c0_0 = arith.constant 0 : index
    %c0_1 = arith.constant 0 : index
    %0 = vector.load %arg1[%c0, %c0_0, %c0_1] : memref<1x8x32xf32, #tpu.memory_space<vmem>>, vector<1x8x32xf32>
    %1 = vector.shape_cast %0 : vector<1x8x32xf32> to vector<8x32xf32>
    %c0_2 = arith.constant 0 : index
    %c0_3 = arith.constant 0 : index
    %c0_4 = arith.constant 0 : index
    %2 = vector.load %arg2[%c0_2, %c0_3, %c0_4] : memref<1x1x8xf32, #tpu.memory_space<vmem>>, vector<1x1x8xf32>
    %3 = vector.shape_cast %2 : vector<1x1x8xf32> to vector<1x8xf32>
    %cst = arith.constant 5.000000e-01 : f32
    %4 = vector.broadcast %cst : f32 to vector<1x8xf32>
    %5 = arith.cmpf ogt, %3, %4 : vector<1x8xf32>
    %c0_5 = arith.constant 0 : index
    %c0_6 = arith.constant 0 : index
    %6 = vector.load %arg3[%c0_5, %c0_6] : memref<1x32xf32, #tpu.memory_space<vmem>>, vector<1x32xf32>
    %c0_7 = arith.constant 0 : index
    %c0_8 = arith.constant 0 : index
    %7 = vector.load %arg4[%c0_7, %c0_8] : memref<1x32xf32, #tpu.memory_space<vmem>>, vector<1x32xf32>
    %cst_9 = arith.constant dense<0.000000e+00> : vector<8xf32>
    %8 = vector.multi_reduction <add>, %1, %cst_9 [1] : vector<8x32xf32> to vector<8xf32>
    %9 = vector.shape_cast %8 : vector<8xf32> to vector<8x1xf32>
    %cst_10 = arith.constant 3.200000e+01 : f32
    %10 = vector.broadcast %cst_10 : f32 to vector<8x1xf32>
    %11 = arith.divf %9, %10 : vector<8x1xf32>
    %12 = vector.broadcast %11 : vector<8x1xf32> to vector<8x32xf32>
    %13 = arith.subf %1, %12 : vector<8x32xf32>
    %14 = arith.mulf %13, %13 : vector<8x32xf32>
    %cst_11 = arith.constant dense<0.000000e+00> : vector<8xf32>
    %15 = vector.multi_reduction <add>, %14, %cst_11 [1] : vector<8x32xf32> to vector<8xf32>
    %16 = vector.shape_cast %15 : vector<8xf32> to vector<8x1xf32>
    %cst_12 = arith.constant 3.200000e+01 : f32
    %17 = vector.broadcast %cst_12 : f32 to vector<8x1xf32>
    %18 = arith.divf %16, %17 : vector<8x1xf32>
    %19 = vector.broadcast %11 : vector<8x1xf32> to vector<8x32xf32>
    %20 = arith.subf %1, %19 : vector<8x32xf32>
    %cst_13 = arith.constant 9.99999974E-6 : f32
    %21 = vector.broadcast %cst_13 : f32 to vector<8x1xf32>
    %22 = arith.addf %18, %21 : vector<8x1xf32>
    %23 = math.rsqrt %22 : vector<8x1xf32>
    %24 = vector.broadcast %23 : vector<8x1xf32> to vector<8x32xf32>
    %25 = arith.mulf %20, %24 : vector<8x32xf32>
    %26 = vector.broadcast %6 : vector<1x32xf32> to vector<8x32xf32>
    %27 = arith.mulf %25, %26 : vector<8x32xf32>
    %28 = vector.broadcast %7 : vector<1x32xf32> to vector<8x32xf32>
    %29 = arith.addf %27, %28 : vector<8x32xf32>
    %30 = arith.truncf %29 : vector<8x32xf32> to vector<8x32xbf16>
    %c0_14 = arith.constant 0 : index
    %c0_15 = arith.constant 0 : index
    %31 = vector.load %arg5[%c0_14, %c0_15] : memref<32x96xbf16, #tpu.memory_space<vmem>>, vector<32x96xbf16>
    %cst_16 = arith.constant dense<0.000000e+00> : vector<8x96xf32>
    %32 = tpu.matmul %30, %31, %cst_16 {dimension_numbers = #tpu.dot_dimension_numbers<[1], [0], [0], [1], [0, 0, 1, 1], [], []>} : vector<8x32xbf16>, vector<32x96xbf16>, vector<8x96xf32> -> vector<8x96xf32>
    %c0_17 = arith.constant 0 : index
    %c0_18 = arith.constant 0 : index
    %33 = vector.load %arg6[%c0_17, %c0_18] : memref<1x96xf32, #tpu.memory_space<vmem>>, vector<1x96xf32>
    %34 = vector.broadcast %33 : vector<1x96xf32> to vector<8x96xf32>
    %35 = arith.addf %32, %34 : vector<8x96xf32>
    %36 = vector.extract_strided_slice %35 {offsets = [0, 0], sizes = [8, 32], strides = [1, 1]} : vector<8x96xf32> to vector<8x32xf32>
    %37 = vector.shape_cast %36 : vector<8x32xf32> to vector<8x4x8xf32>
    %38 = tpu.transpose %37, [1, 0, 2] : vector<8x4x8xf32> -> vector<4x8x8xf32>
    %39 = arith.truncf %38 : vector<4x8x8xf32> to vector<4x8x8xbf16>
    %40 = vector.extract_strided_slice %35 {offsets = [0, 32], sizes = [8, 32], strides = [1, 1]} : vector<8x96xf32> to vector<8x32xf32>
    %41 = vector.shape_cast %40 : vector<8x32xf32> to vector<8x4x8xf32>
    %42 = tpu.transpose %41, [1, 0, 2] : vector<8x4x8xf32> -> vector<4x8x8xf32>
    %43 = arith.truncf %42 : vector<4x8x8xf32> to vector<4x8x8xbf16>
    %44 = vector.extract_strided_slice %35 {offsets = [0, 64], sizes = [8, 32], strides = [1, 1]} : vector<8x96xf32> to vector<8x32xf32>
    %45 = vector.shape_cast %44 : vector<8x32xf32> to vector<8x4x8xf32>
    %46 = tpu.transpose %45, [1, 0, 2] : vector<8x4x8xf32> -> vector<4x8x8xf32>
    %47 = arith.truncf %46 : vector<4x8x8xf32> to vector<4x8x8xbf16>
    "tpu.trace_start"() <{level = 10 : i32, message = "hqd,hkd->hqk"}> : () -> ()
    %cst_19 = arith.constant dense<0.000000e+00> : vector<4x8x8xf32>
    %48 = tpu.matmul %39, %43, %cst_19 {dimension_numbers = #tpu.dot_dimension_numbers<[2], [2], [1], [1], [0, 0, 0, 1, 1, 1], [0], [0]>} : vector<4x8x8xbf16>, vector<4x8x8xbf16>, vector<4x8x8xf32> -> vector<4x8x8xf32>
    "tpu.trace_stop"() : () -> ()
    %cst_20 = arith.constant 0.353553385 : f32
    %49 = vector.broadcast %cst_20 : f32 to vector<4x8x8xf32>
    %50 = arith.mulf %48, %49 : vector<4x8x8xf32>
    %51 = tpu.iota {dimensions = array<i32: 0>} : vector<8x8xi32>
    %52 = tpu.iota {dimensions = array<i32: 1>} : vector<8x8xi32>
    %53 = arith.cmpi sge, %51, %52 : vector<8x8xi32>
    %54 = vector.broadcast %5 : vector<1x8xi1> to vector<8x8xi1>
    %55 = arith.andi %53, %54 : vector<8x8xi1>
    %56 = vector.shape_cast %55 : vector<8x8xi1> to vector<1x8x8xi1>
    %cst_21 = arith.constant -1.000000e+09 : f32
    %57 = vector.shape_cast %56 : vector<1x8x8xi1> to vector<1x8x8xi1>
    %58 = vector.broadcast %57 : vector<1x8x8xi1> to vector<4x8x8xi1>
    %59 = vector.broadcast %cst_21 : f32 to vector<4x8x8xf32>
    %60 = arith.select %58, %50, %59 : vector<4x8x8xi1>, vector<4x8x8xf32>
    %cst_22 = arith.constant dense<0xFF800000> : vector<4x8xf32>
    %61 = vector.multi_reduction <maximumf>, %60, %cst_22 [2] : vector<4x8x8xf32> to vector<4x8xf32>
    %62 = vector.shape_cast %61 : vector<4x8xf32> to vector<4x8x1xf32>
    %63 = vector.broadcast %62 : vector<4x8x1xf32> to vector<4x8x8xf32>
    %64 = arith.subf %60, %63 : vector<4x8x8xf32>
    %65 = math.exp %64 : vector<4x8x8xf32>
    %cst_23 = arith.constant dense<0.000000e+00> : vector<4x8xf32>
    %66 = vector.multi_reduction <add>, %65, %cst_23 [2] : vector<4x8x8xf32> to vector<4x8xf32>
    %67 = vector.shape_cast %66 : vector<4x8xf32> to vector<4x8x1xf32>
    %68 = tpu.reciprocal %67 {approx = true} : vector<4x8x1xf32> -> vector<4x8x1xf32>
    %69 = vector.broadcast %68 : vector<4x8x1xf32> to vector<4x8x8xf32>
    %70 = arith.mulf %65, %69 : vector<4x8x8xf32>
    %71 = arith.truncf %70 : vector<4x8x8xf32> to vector<4x8x8xbf16>
    "tpu.trace_start"() <{level = 10 : i32, message = "hqk,hkd->hqd"}> : () -> ()
    %cst_24 = arith.constant dense<0.000000e+00> : vector<4x8x8xf32>
    %72 = tpu.matmul %71, %47, %cst_24 {dimension_numbers = #tpu.dot_dimension_numbers<[2], [1], [1], [2], [0, 0, 0, 1, 1, 2], [0], [0]>} : vector<4x8x8xbf16>, vector<4x8x8xbf16>, vector<4x8x8xf32> -> vector<4x8x8xf32>
    "tpu.trace_stop"() : () -> ()
    %73 = tpu.transpose %72, [1, 0, 2] : vector<4x8x8xf32> -> vector<8x4x8xf32>
    %74 = vector.shape_cast %73 : vector<8x4x8xf32> to vector<8x32xf32>
    %75 = arith.truncf %74 : vector<8x32xf32> to vector<8x32xbf16>
    %c0_25 = arith.constant 0 : index
    %c0_26 = arith.constant 0 : index
    %76 = vector.load %arg7[%c0_25, %c0_26] : memref<32x32xbf16, #tpu.memory_space<vmem>>, vector<32x32xbf16>
    %cst_27 = arith.constant dense<0.000000e+00> : vector<8x32xf32>
    %77 = tpu.matmul %75, %76, %cst_27 {dimension_numbers = #tpu.dot_dimension_numbers<[1], [0], [0], [1], [0, 0, 1, 1], [], []>} : vector<8x32xbf16>, vector<32x32xbf16>, vector<8x32xf32> -> vector<8x32xf32>
    %c0_28 = arith.constant 0 : index
    %c0_29 = arith.constant 0 : index
    %78 = vector.load %arg8[%c0_28, %c0_29] : memref<1x32xf32, #tpu.memory_space<vmem>>, vector<1x32xf32>
    %79 = vector.broadcast %78 : vector<1x32xf32> to vector<8x32xf32>
    %80 = arith.addf %77, %79 : vector<8x32xf32>
    %81 = arith.addf %1, %80 : vector<8x32xf32>
    %c0_30 = arith.constant 0 : index
    %c0_31 = arith.constant 0 : index
    %c0_32 = arith.constant 0 : index
    %82 = vector.load %arg9[%c0_30, %c0_31, %c0_32] : memref<1x8x32xf32, #tpu.memory_space<vmem>>, vector<1x8x32xf32>
    %83 = vector.shape_cast %82 : vector<1x8x32xf32> to vector<8x32xf32>
    %84 = vector.shape_cast %81 : vector<8x32xf32> to vector<1x8x32xf32>
    tpu.vector_store %arg9[%c0_30, %c0_31, %c0_32], %84 {strides = array<i32>} : memref<1x8x32xf32, #tpu.memory_space<vmem>>, vector<1x8x32xf32>,
    return
  }
  func.func @transform_0(%arg0: i32) -> (i32, i32, i32) {
    %c0_i32 = arith.constant 0 : i32
    %c0_i32_0 = arith.constant 0 : i32
    %c0_i32_1 = arith.constant 0 : i32
    return %arg0, %c0_i32, %c0_i32_0 : i32, i32, i32
  }
  func.func @transform_1(%arg0: i32) -> (i32, i32, i32) {
    %c0_i32 = arith.constant 0 : i32
    %c0_i32_0 = arith.constant 0 : i32
    %c0_i32_1 = arith.constant 0 : i32
    return %arg0, %c0_i32, %c0_i32_0 : i32, i32, i32
  }
  func.func @transform_2(%arg0: i32) -> (i32, i32) {
    %c0_i32 = arith.constant 0 : i32
    %c0_i32_0 = arith.constant 0 : i32
    %c0_i32_1 = arith.constant 0 : i32
    return %c0_i32, %c0_i32_0 : i32, i32
  }
  func.func @transform_3(%arg0: i32) -> (i32, i32) {
    %c0_i32 = arith.constant 0 : i32
    %c0_i32_0 = arith.constant 0 : i32
    %c0_i32_1 = arith.constant 0 : i32
    return %c0_i32, %c0_i32_0 : i32, i32
  }
  func.func @transform_4(%arg0: i32) -> (i32, i32) {
    %c0_i32 = arith.constant 0 : i32
    %c0_i32_0 = arith.constant 0 : i32
    %c0_i32_1 = arith.constant 0 : i32
    return %c0_i32, %c0_i32_0 : i32, i32
  }
  func.func @transform_5(%arg0: i32) -> (i32, i32) {
    %c0_i32 = arith.constant 0 : i32
    %c0_i32_0 = arith.constant 0 : i32
    %c0_i32_1 = arith.constant 0 : i32
    return %c0_i32, %c0_i32_0 : i32, i32
  }
  func.func @transform_6(%arg0: i32) -> (i32, i32) {
    %c0_i32 = arith.constant 0 : i32
    %c0_i32_0 = arith.constant 0 : i32
    %c0_i32_1 = arith.constant 0 : i32
    return %c0_i32, %c0_i32_0 : i32, i32
  }
  func.func @transform_7(%arg0: i32) -> (i32, i32) {
    %c0_i32 = arith.constant 0 : i32
    %c0_i32_0 = arith.constant 0 : i32
    %c0_i32_1 = arith.constant 0 : i32
    return %c0_i32, %c0_i32_0 : i32, i32
  }
  func.func @transform_8(%arg0: i32) -> (i32, i32, i32) {
    %c0_i32 = arith.constant 0 : i32
    %c0_i32_0 = arith.constant 0 : i32
    %c0_i32_1 = arith.constant 0 : i32
    return %arg0, %c0_i32, %c0_i32_0 : i32, i32, i32
  }
}

</mosaic_0001>

<llo_original>
// kernel: tpu_custom_call.1
$region0: #{tpu_custom_call.1}
  #allocation0 [shape = 'u32[]', space=smem, size = 0x4, offset = 0x4, fixed_abs, tag = 'smem constant byte address 0x4 - core index']
  #allocation1 [shape = 'u32[144,128]{1,0:T(1,128)}', space=vmem, size = 0x12000, scoped, tag = 'internal scratch']
  %s0 = inlined_call_operand.hbm [shape: f32[2,8,32], index: 0, kind: input, shape index: {}]
  %s1 = inlined_call_operand.hbm [shape: f32[2,1,8], index: 1, kind: input, shape index: {}]
  %s2 = inlined_call_operand.hbm [shape: f32[1,32], index: 2, kind: input, shape index: {}]
  %s3 = inlined_call_operand.hbm [shape: f32[1,32], index: 3, kind: input, shape index: {}]
  %s4 = inlined_call_operand.hbm [shape: bf16[32,96], index: 4, kind: input, shape index: {}]
  %s5 = inlined_call_operand.hbm [shape: f32[1,96], index: 5, kind: input, shape index: {}]
  %s6 = inlined_call_operand.hbm [shape: bf16[32,32], index: 6, kind: input, shape index: {}]
  %s7 = inlined_call_operand.hbm [shape: f32[1,32], index: 7, kind: input, shape index: {}]
  %s8 = inlined_call_operand.hbm [shape: f32[2,8,32], index: 8, kind: output, shape index: {}]
  %s9 = sld [smem:[#allocation0]]
  $region97: #{tpu_custom_call.1} parent=0
    _
  %s11 = ssub.s32 1, %s9
  %s12 = scalar_select 0, %s11, %s9
  $region1: #{tpu_custom_call.1} parent=0
    #allocation2 [shape = 'u8[8192]{0}', space=vmem, size = 0x2000, scoped, tag = 'input window, operand 0']
    #allocation3 [shape = 's32[2]{0}', space=sflag, size = 0x8, scoped, tag = 'scoped memory for tpu_custom_call.1']
    #allocation4 [shape = 's32[2]{0}', space=sflag, size = 0x8, scoped, tag = 'scoped memory for tpu_custom_call.1']
    #allocation5 [shape = 'u8[1024]{0}', space=vmem, size = 0x400, scoped, tag = 'input window, operand 1']
    #allocation6 [shape = 's32[2]{0}', space=sflag, size = 0x8, scoped, tag = 'scoped memory for tpu_custom_call.1']
    #allocation7 [shape = 'u8[512]{0}', space=vmem, size = 0x400, scoped, tag = 'input window, operand 2, single buffered']
    #allocation8 [shape = 'u8[512]{0}', space=vmem, size = 0x400, scoped, tag = 'input window, operand 3, single buffered']
    #allocation9 [shape = 's32[1]{0}', space=sflag, size = 0x4, scoped, tag = 'scoped memory for tpu_custom_call.1']
    #allocation10 [shape = 'u8[8192]{0}', space=vmem, size = 0x2000, scoped, tag = 'input window, operand 4, single buffered']
    #allocation11 [shape = 'u8[512]{0}', space=vmem, size = 0x400, scoped, tag = 'input window, operand 5, single buffered']
    #allocation12 [shape = 's32[1]{0}', space=sflag, size = 0x4, scoped, tag = 'scoped memory for tpu_custom_call.1']
    #allocation13 [shape = 'u8[8192]{0}', space=vmem, size = 0x2000, scoped, tag = 'input window, operand 6, single buffered']
    #allocation14 [shape = 'u8[512]{0}', space=vmem, size = 0x400, scoped, tag = 'input window, operand 7, single buffered']
    #allocation15 [shape = 's32[1]{0}', space=sflag, size = 0x4, scoped, tag = 'scoped memory for tpu_custom_call.1']
    #allocation16 [shape = 'u8[8192]{0}', space=vmem, size = 0x2000, scoped, tag = 'output window, operand 0']
    %13 = vsyncpa [#allocation3], 0
    %s14 = scalar_lea.sflag [#allocation3], 1
    %15 = vsyncpa %s14, 0
    %16 = vsyncpa [#allocation6], 0
    %s17 = scalar_lea.sflag [#allocation6], 1
    %18 = vsyncpa %s17, 0
    %19 = vsyncpa [#allocation9], 0
    %20 = vsyncpa [#allocation12], 0
    %21 = vsyncpa [#allocation15], 0
    %22 = vsyncpa [#allocation4], 0
    %s23 = scalar_lea.sflag [#allocation4], 1
    %24 = vsyncpa %s23, 0
    loop: start=0, step=1, limit=4
    $region2: #{tpu_custom_call.1} parent=1 // loop_pre_header
      _
    $region3: #{tpu_custom_call.1} parent=1 // loop_header
      %s26 = sphi 0, %s30
      %p27 = scmp.ge.s32.totalorder %s26, 4
      %s36 = sphi 0, %s38
      %s39 = sphi 0, %s36
      %s40 = sphi 0, %s39
      %s56 = sphi 0, %s40
      %s62 = sphi 0, %s64
      %s65 = sphi 0, %s62
      %s66 = sphi 0, %s65
      %s82 = sphi 0, %s66
      %s86 = sphi 0, %s86
      %s88 = sphi 0, %s86
      %s89 = sphi 0, %s88
      %s103 = sphi 0, %s89
      %s107 = sphi 0, %s107
      %s109 = sphi 0, %s107
      %s110 = sphi 0, %s109
      %s124 = sphi 0, %s110
      %s128 = sphi 0, %s128
      %s130 = sphi 0, %s128
      %s131 = sphi 0, %s130
      %s145 = sphi 0, %s131
      %s149 = sphi 0, %s149
      %s151 = sphi 0, %s149
      %s152 = sphi 0, %s151
      %s166 = sphi 0, %s152
      %s170 = sphi 0, %s170
      %s172 = sphi 0, %s170
      %s173 = sphi 0, %s172
      %s187 = sphi 0, %s173
      %s191 = sphi 0, %s191
      %s193 = sphi 0, %s191
      %s194 = sphi 0, %s193
      %s208 = sphi 0, %s194
      %s214 = sphi 0, %s216
      %s217 = sphi 0, %s214
      %s218 = sphi 0, %s217
      %s234 = sphi 0, %s218
    $region4: #{tpu_custom_call.1} parent=1 // loop_header_branch
      %29 = sbr.rel (%p27) target = $region8
    $region5: #{tpu_custom_call.1} parent=1 // loop_body
      %s31 = ssub.s32 %s26, 1
      %s32 = ssub.s32 %s26, 2
      %s33 = sadd.s32 %s26, 1
      %s34 = ssub.s32 %s26, %s33
      %p35 = scmp.eq.s32.totalorder %s34, 0
      %s37 = sadd.s32 %s36, 1
      %s38 = scalar_select %p35, %s36, %s37
      %p41 = pneg %p35
      %p42 = scmp.eq.s32.totalorder %s26, 1
      %p43 = por %p41, %p42
      %p44 = scmp.ne.s32.totalorder %s36, %s39
      %p45 = scmp.eq.s32.totalorder %s26, 0
      %p46 = por %p44, %p45
      %p47 = scmp.ne.s32.totalorder %s36, %s39
      %p48 = scmp.eq.s32.totalorder %s31, 1
      %p49 = por %p47, %p48
      %p50 = scmp.ne.s32.totalorder %s39, %s40
      %p51 = scmp.eq.s32.totalorder %s31, 0
      %p52 = por %p50, %p51
      %p53 = scmp.ne.s32.totalorder %s39, %s40
      %p54 = scmp.eq.s32.totalorder %s32, 1
      %p55 = por %p53, %p54
      %p57 = scmp.ne.s32.totalorder %s40, %s56
      %p58 = scmp.eq.s32.totalorder %s32, 0
      %p59 = por %p57, %p58
      %s60 = ssub.s32 %s26, %s33
      %p61 = scmp.eq.s32.totalorder %s60, 0
      %s63 = sadd.s32 %s62, 1
      %s64 = scalar_select %p61, %s62, %s63
      %p67 = pneg %p61
      %p68 = scmp.eq.s32.totalorder %s26, 1
      %p69 = por %p67, %p68
      %p70 = scmp.ne.s32.totalorder %s62, %s65
      %p71 = scmp.eq.s32.totalorder %s26, 0
      %p72 = por %p70, %p71
      %p73 = scmp.ne.s32.totalorder %s62, %s65
      %p74 = scmp.eq.s32.totalorder %s31, 1
      %p75 = por %p73, %p74
      %p76 = scmp.ne.s32.totalorder %s65, %s66
      %p77 = scmp.eq.s32.totalorder %s31, 0
      %p78 = por %p76, %p77
      %p79 = scmp.ne.s32.totalorder %s65, %s66
      %p80 = scmp.eq.s32.totalorder %s32, 1
      %p81 = por %p79, %p80
      %p83 = scmp.ne.s32.totalorder %s66, %s82
      %p84 = scmp.eq.s32.totalorder %s32, 0
      %p85 = por %p83, %p84
      %s87 = sadd.s32 %s86, 1
      %p90 = scmp.eq.s32.totalorder %s26, 1
      %p91 = scmp.ne.s32.totalorder %s86, %s88
      %p92 = scmp.eq.s32.totalorder %s26, 0
      %p93 = por %p91, %p92
      %p94 = scmp.ne.s32.totalorder %s86, %s88
      %p95 = scmp.eq.s32.totalorder %s31, 1
      %p96 = por %p94, %p95
      %p97 = scmp.ne.s32.totalorder %s88, %s89
      %p98 = scmp.eq.s32.totalorder %s31, 0
      %p99 = por %p97, %p98
      %p100 = scmp.ne.s32.totalorder %s88, %s89
      %p101 = scmp.eq.s32.totalorder %s32, 1
      %p102 = por %p100, %p101
      %p104 = scmp.ne.s32.totalorder %s89, %s103
      %p105 = scmp.eq.s32.totalorder %s32, 0
      %p106 = por %p104, %p105
      %s108 = sadd.s32 %s107, 1
      %p111 = scmp.eq.s32.totalorder %s26, 1
      %p112 = scmp.ne.s32.totalorder %s107, %s109
      %p113 = scmp.eq.s32.totalorder %s26, 0
      %p114 = por %p112, %p113
      %p115 = scmp.ne.s32.totalorder %s107, %s109
      %p116 = scmp.eq.s32.totalorder %s31, 1
      %p117 = por %p115, %p116
      %p118 = scmp.ne.s32.totalorder %s109, %s110
      %p119 = scmp.eq.s32.totalorder %s31, 0
      %p120 = por %p118, %p119
      %p121 = scmp.ne.s32.totalorder %s109, %s110
      %p122 = scmp.eq.s32.totalorder %s32, 1
      %p123 = por %p121, %p122
      %p125 = scmp.ne.s32.totalorder %s110, %s124
      %p126 = scmp.eq.s32.totalorder %s32, 0
      %p127 = por %p125, %p126
      %s129 = sadd.s32 %s128, 1
      %p132 = scmp.eq.s32.totalorder %s26, 1
      %p133 = scmp.ne.s32.totalorder %s128, %s130
      %p134 = scmp.eq.s32.totalorder %s26, 0
      %p135 = por %p133, %p134
      %p136 = scmp.ne.s32.totalorder %s128, %s130
      %p137 = scmp.eq.s32.totalorder %s31, 1
      %p138 = por %p136, %p137
      %p139 = scmp.ne.s32.totalorder %s130, %s131
      %p140 = scmp.eq.s32.totalorder %s31, 0
      %p141 = por %p139, %p140
      %p142 = scmp.ne.s32.totalorder %s130, %s131
      %p143 = scmp.eq.s32.totalorder %s32, 1
      %p144 = por %p142, %p143
      %p146 = scmp.ne.s32.totalorder %s131, %s145
      %p147 = scmp.eq.s32.totalorder %s32, 0
      %p148 = por %p146, %p147
      %s150 = sadd.s32 %s149, 1
      %p153 = scmp.eq.s32.totalorder %s26, 1
      %p154 = scmp.ne.s32.totalorder %s149, %s151
      %p155 = scmp.eq.s32.totalorder %s26, 0
      %p156 = por %p154, %p155
      %p157 = scmp.ne.s32.totalorder %s149, %s151
      %p158 = scmp.eq.s32.totalorder %s31, 1
      %p159 = por %p157, %p158
      %p160 = scmp.ne.s32.totalorder %s151, %s152
      %p161 = scmp.eq.s32.totalorder %s31, 0
      %p162 = por %p160, %p161
      %p163 = scmp.ne.s32.totalorder %s151, %s152
      %p164 = scmp.eq.s32.totalorder %s32, 1
      %p165 = por %p163, %p164
      %p167 = scmp.ne.s32.totalorder %s152, %s166
      %p168 = scmp.eq.s32.totalorder %s32, 0
      %p169 = por %p167, %p168
      %s171 = sadd.s32 %s170, 1
      %p174 = scmp.eq.s32.totalorder %s26, 1
      %p175 = scmp.ne.s32.totalorder %s170, %s172
      %p176 = scmp.eq.s32.totalorder %s26, 0
      %p177 = por %p175, %p176
      %p178 = scmp.ne.s32.totalorder %s170, %s172
      %p179 = scmp.eq.s32.totalorder %s31, 1
      %p180 = por %p178, %p179
      %p181 = scmp.ne.s32.totalorder %s172, %s173
      %p182 = scmp.eq.s32.totalorder %s31, 0
      %p183 = por %p181, %p182
      %p184 = scmp.ne.s32.totalorder %s172, %s173
      %p185 = scmp.eq.s32.totalorder %s32, 1
      %p186 = por %p184, %p185
      %p188 = scmp.ne.s32.totalorder %s173, %s187
      %p189 = scmp.eq.s32.totalorder %s32, 0
      %p190 = por %p188, %p189
      %s192 = sadd.s32 %s191, 1
      %p195 = scmp.eq.s32.totalorder %s26, 1
      %p196 = scmp.ne.s32.totalorder %s191, %s193
      %p197 = scmp.eq.s32.totalorder %s26, 0
      %p198 = por %p196, %p197
      %p199 = scmp.ne.s32.totalorder %s191, %s193
      %p200 = scmp.eq.s32.totalorder %s31, 1
      %p201 = por %p199, %p200
      %p202 = scmp.ne.s32.totalorder %s193, %s194
      %p203 = scmp.eq.s32.totalorder %s31, 0
      %p204 = por %p202, %p203
      %p205 = scmp.ne.s32.totalorder %s193, %s194
      %p206 = scmp.eq.s32.totalorder %s32, 1
      %p207 = por %p205, %p206
      %p209 = scmp.ne.s32.totalorder %s194, %s208
      %p210 = scmp.eq.s32.totalorder %s32, 0
      %p211 = por %p209, %p210
      %s212 = ssub.s32 %s26, %s33
      %p213 = scmp.eq.s32.totalorder %s212, 0
      %s215 = sadd.s32 %s214, 1
      %s216 = scalar_select %p213, %s214, %s215
      %p219 = pneg %p213
      %p220 = scmp.eq.s32.totalorder %s26, 1
      %p221 = por %p219, %p220
      %p222 = scmp.ne.s32.totalorder %s214, %s217
      %p223 = scmp.eq.s32.totalorder %s26, 0
      %p224 = por %p222, %p223
      %p225 = scmp.ne.s32.totalorder %s214, %s217
      %p226 = scmp.eq.s32.totalorder %s31, 1
      %p227 = por %p225, %p226
      %p228 = scmp.ne.s32.totalorder %s217, %s218
      %p229 = scmp.eq.s32.totalorder %s31, 0
      %p230 = por %p228, %p229
      %p231 = scmp.ne.s32.totalorder %s217, %s218
      %p232 = scmp.eq.s32.totalorder %s32, 1
      %p233 = por %p231, %p232
      %p235 = scmp.ne.s32.totalorder %s218, %s234
      %p236 = scmp.eq.s32.totalorder %s32, 0
      %p237 = por %p235, %p236
      %p238 = scmp.le.s32.totalorder 1, %s26
      %p239 = scmp.lt.s32.totalorder %s26, 3
      %p240 = pnand %p238, %p239
      %p241 = pneg %p240
      // Predicated region
      $region9: #{tpu_custom_call.1} parent=5 // pred_check
        _
      $region10: #{tpu_custom_call.1} parent=5 // pred_check_branch
        %243 = sbr.rel (%p240) target = $region12
      $region11: #{tpu_custom_call.1} parent=5 // pred_region
        %s244 = ssub.s32 %s26, 1
        // Predicated region
        $region13: #{tpu_custom_call.1} parent=11 // pred_check
          %p245 = pneg %p99
        $region14: #{tpu_custom_call.1} parent=11 // pred_check_branch
          %247 = sbr.rel (%p245) target = $region16
        $region15: #{tpu_custom_call.1} parent=11 // pred_region
          %s249 = ssub.s32 16, 16
          %250 = vsyncadd [#allocation6], %s249
          %s252 = sshll.u32 [#allocation7], 4
          %s253 = int_to_ptr.vmem [resolvable:$true] %s252
          %255 = dma.hbm_to_vmem [thread:$0]  %s2, 16, %s253, [#allocation6]
        $region16: #{tpu_custom_call.1} parent=11 // pred_fallthru
          _
        // Predicated region
        $region17: #{tpu_custom_call.1} parent=11 // pred_check
          %p256 = pneg %p120
        $region18: #{tpu_custom_call.1} parent=11 // pred_check_branch
          %258 = sbr.rel (%p256) target = $region20
        $region19: #{tpu_custom_call.1} parent=11 // pred_region
          %s260 = ssub.s32 16, 16
          %261 = vsyncadd [#allocation9], %s260
          %s263 = sshll.u32 [#allocation8], 4
          %s264 = int_to_ptr.vmem [resolvable:$true] %s263
          %266 = dma.hbm_to_vmem [thread:$0]  %s3, 16, %s264, [#allocation9]
        $region20: #{tpu_custom_call.1} parent=11 // pred_fallthru
          _
        // Predicated region
        $region21: #{tpu_custom_call.1} parent=11 // pred_check
          %p267 = pneg %p141
        $region22: #{tpu_custom_call.1} parent=11 // pred_check_branch
          %269 = sbr.rel (%p267) target = $region24
        $region23: #{tpu_custom_call.1} parent=11 // pred_region
          %s271 = ssub.s32 256, 256
          %272 = vsyncadd [#allocation9], %s271
          %s273 = sshll.u32 [#allocation10], 4
          %s274 = int_to_ptr.vmem [resolvable:$true] %s273
          %279 = dma.hbm_to_vmem [thread:$0]  %s4, 256, %s274, [#allocation9], 64, 64, 4
        $region24: #{tpu_custom_call.1} parent=11 // pred_fallthru
          _
        // Predicated region
        $region25: #{tpu_custom_call.1} parent=11 // pred_check
          %p280 = pneg %p162
        $region26: #{tpu_custom_call.1} parent=11 // pred_check_branch
          %282 = sbr.rel (%p280) target = $region28
        $region27: #{tpu_custom_call.1} parent=11 // pred_region
          %s284 = ssub.s32 16, 16
          %285 = vsyncadd [#allocation12], %s284
          %s287 = sshll.u32 [#allocation11], 4
          %s288 = int_to_ptr.vmem [resolvable:$true] %s287
          %290 = dma.hbm_to_vmem [thread:$0]  %s5, 16, %s288, [#allocation12]
        $region28: #{tpu_custom_call.1} parent=11 // pred_fallthru
          _
        // Predicated region
        $region29: #{tpu_custom_call.1} parent=11 // pred_check
          %p291 = pneg %p183
        $region30: #{tpu_custom_call.1} parent=11 // pred_check_branch
          %293 = sbr.rel (%p291) target = $region32
        $region31: #{tpu_custom_call.1} parent=11 // pred_region
          %s295 = ssub.s32 256, 256
          %296 = vsyncadd [#allocation12], %s295
          %s297 = sshll.u32 [#allocation13], 4
          %s298 = int_to_ptr.vmem [resolvable:$true] %s297
          %303 = dma.hbm_to_vmem [thread:$0]  %s6, 256, %s298, [#allocation12], 64, 64, 4
        $region32: #{tpu_custom_call.1} parent=11 // pred_fallthru
          _
        // Predicated region
        $region33: #{tpu_custom_call.1} parent=11 // pred_check
          %p304 = pneg %p204
        $region34: #{tpu_custom_call.1} parent=11 // pred_check_branch
          %306 = sbr.rel (%p304) target = $region36
        $region35: #{tpu_custom_call.1} parent=11 // pred_region
          %s308 = ssub.s32 16, 16
          %309 = vsyncadd [#allocation15], %s308
          %s311 = sshll.u32 [#allocation14], 4
          %s312 = int_to_ptr.vmem [resolvable:$true] %s311
          %314 = dma.hbm_to_vmem [thread:$0]  %s7, 16, %s312, [#allocation15]
        $region36: #{tpu_custom_call.1} parent=11 // pred_fallthru
          _
      $region12: #{tpu_custom_call.1} parent=5 // pred_fallthru
        _
      %p315 = scmp.lt.s32.totalorder %s26, 2
      // Predicated region
      $region37: #{tpu_custom_call.1} parent=5 // pred_check
        %p316 = pneg %p315
      $region38: #{tpu_custom_call.1} parent=5 // pred_check_branch
        %318 = sbr.rel (%p316) target = $region40
      $region39: #{tpu_custom_call.1} parent=5 // pred_region
        // Predicated region
        $region41: #{tpu_custom_call.1} parent=39 // pred_check
          %p319 = pneg %p46
        $region42: #{tpu_custom_call.1} parent=39 // pred_check_branch
          %321 = sbr.rel (%p319) target = $region44
        $region43: #{tpu_custom_call.1} parent=39 // pred_region
          %s322 = sand.u32 %s36, 1
          %s323 = scalar_lea.sflag [#allocation3], %s322
          %s324 = sand.u32 %s36, 1
          %s325 = smul.addr %s324, 8
          %s326 = scalar_lea.vmem [#allocation2], %s325
          %s328 = ssub.s32 128, 128
          %329 = vsyncadd %s323, %s328
          %s330 = smul.addr %s26, 128
          %s331 = scalar_lea.hbm %s0, %s330
          %s333 = sshll.u32 %s326, 4
          %s334 = int_to_ptr.vmem [resolvable:$true] %s333
          %336 = dma.hbm_to_vmem [thread:$0]  %s331, 128, %s334, %s323
        $region44: #{tpu_custom_call.1} parent=39 // pred_fallthru
          _
        // Predicated region
        $region45: #{tpu_custom_call.1} parent=39 // pred_check
          %p337 = pneg %p72
        $region46: #{tpu_custom_call.1} parent=39 // pred_check_branch
          %339 = sbr.rel (%p337) target = $region48
        $region47: #{tpu_custom_call.1} parent=39 // pred_region
          %s340 = sand.u32 %s26, 1
          %s341 = scalar_lea.sflag [#allocation6], %s340
          %s342 = sand.u32 %s62, 1
          %s343 = scalar_lea.vmem [#allocation5], %s342
          %s345 = ssub.s32 16, 16
          %346 = vsyncadd %s341, %s345
          %s347 = smul.addr %s26, 16
          %s348 = scalar_lea.hbm %s1, %s347
          %s350 = sshll.u32 %s343, 4
          %s351 = int_to_ptr.vmem [resolvable:$true] %s350
          %353 = dma.hbm_to_vmem [thread:$0]  %s348, 16, %s351, %s341
        $region48: #{tpu_custom_call.1} parent=39 // pred_fallthru
          _
      $region40: #{tpu_custom_call.1} parent=5 // pred_fallthru
        _
      %p354 = scmp.le.s32.totalorder 1, %s26
      %p355 = scmp.lt.s32.totalorder %s26, 3
      %p356 = pnand %p354, %p355
      %p357 = pneg %p356
      // Predicated region
      $region49: #{tpu_custom_call.1} parent=5 // pred_check
        _
      $region50: #{tpu_custom_call.1} parent=5 // pred_check_branch
        %359 = sbr.rel (%p356) target = $region52
      $region51: #{tpu_custom_call.1} parent=5 // pred_region
        %s360 = ssub.s32 %s26, 1
        %s361 = sand.u32 %s39, 1
        %s362 = scalar_lea.sflag [#allocation3], %s361
        %s363 = sand.u32 %s39, 1
        %s364 = smul.addr %s363, 8
        %s365 = scalar_lea.vmem [#allocation2], %s364
        // Predicated region
        $region53: #{tpu_custom_call.1} parent=51 // pred_check
          %p366 = pneg %p52
        $region54: #{tpu_custom_call.1} parent=51 // pred_check_branch
          %368 = sbr.rel (%p366) target = $region56
        $region55: #{tpu_custom_call.1} parent=51 // pred_region
          %369 = dma.done %s362, 128
        $region56: #{tpu_custom_call.1} parent=51 // pred_fallthru
          _
        %s370 = sand.u32 %s31, 1
        %s371 = scalar_lea.sflag [#allocation6], %s370
        %s372 = sand.u32 %s65, 1
        %s373 = scalar_lea.vmem [#allocation5], %s372
        // Predicated region
        $region57: #{tpu_custom_call.1} parent=51 // pred_check
          %p374 = pneg %p78
        $region58: #{tpu_custom_call.1} parent=51 // pred_check_branch
          %376 = sbr.rel (%p374) target = $region60
        $region59: #{tpu_custom_call.1} parent=51 // pred_region
          %377 = dma.done %s371, 16
        $region60: #{tpu_custom_call.1} parent=51 // pred_fallthru
          _
        // Predicated region
        $region61: #{tpu_custom_call.1} parent=51 // pred_check
          %p378 = pneg %p99
        $region62: #{tpu_custom_call.1} parent=51 // pred_check_branch
          %380 = sbr.rel (%p378) target = $region64
        $region63: #{tpu_custom_call.1} parent=51 // pred_region
          %381 = dma.done [#allocation6], 16
        $region64: #{tpu_custom_call.1} parent=51 // pred_fallthru
          _
        // Predicated region
        $region65: #{tpu_custom_call.1} parent=51 // pred_check
          %p382 = pneg %p120
        $region66: #{tpu_custom_call.1} parent=51 // pred_check_branch
          %384 = sbr.rel (%p382) target = $region68
        $region67: #{tpu_custom_call.1} parent=51 // pred_region
          %385 = dma.done [#allocation9], 16
        $region68: #{tpu_custom_call.1} parent=51 // pred_fallthru
          _
        // Predicated region
        $region69: #{tpu_custom_call.1} parent=51 // pred_check
          %p386 = pneg %p141
        $region70: #{tpu_custom_call.1} parent=51 // pred_check_branch
          %388 = sbr.rel (%p386) target = $region72
        $region71: #{tpu_custom_call.1} parent=51 // pred_region
          %389 = dma.done [#allocation9], 256
        $region72: #{tpu_custom_call.1} parent=51 // pred_fallthru
          _
        // Predicated region
        $region73: #{tpu_custom_call.1} parent=51 // pred_check
          %p390 = pneg %p162
        $region74: #{tpu_custom_call.1} parent=51 // pred_check_branch
          %392 = sbr.rel (%p390) target = $region76
        $region75: #{tpu_custom_call.1} parent=51 // pred_region
          %393 = dma.done [#allocation12], 16
        $region76: #{tpu_custom_call.1} parent=51 // pred_fallthru
          _
        // Predicated region
        $region77: #{tpu_custom_call.1} parent=51 // pred_check
          %p394 = pneg %p183
        $region78: #{tpu_custom_call.1} parent=51 // pred_check_branch
          %396 = sbr.rel (%p394) target = $region80
        $region79: #{tpu_custom_call.1} parent=51 // pred_region
          %397 = dma.done [#allocation12], 256
        $region80: #{tpu_custom_call.1} parent=51 // pred_fallthru
          _
        // Predicated region
        $region81: #{tpu_custom_call.1} parent=51 // pred_check
          %p398 = pneg %p204
        $region82: #{tpu_custom_call.1} parent=51 // pred_check_branch
          %400 = sbr.rel (%p398) target = $region84
        $region83: #{tpu_custom_call.1} parent=51 // pred_region
          %401 = dma.done [#allocation15], 16
        $region84: #{tpu_custom_call.1} parent=51 // pred_fallthru
          _
        %s402 = sand.u32 %s39, 1
        %s403 = scalar_lea.sflag [#allocation3], %s402
        %s404 = sand.u32 %s39, 1
        %s405 = smul.addr %s404, 8
        %s406 = scalar_lea.vmem [#allocation2], %s405
        %p407 = pneg %p52
        %p408 = pneg %p49
        %s409 = sand.u32 %s31, 1
        %s410 = scalar_lea.sflag [#allocation6], %s409
        %s411 = sand.u32 %s65, 1
        %s412 = scalar_lea.vmem [#allocation5], %s411
        %p413 = pneg %p78
        %p414 = pneg %p75
        %p415 = pneg %p99
        %p416 = pneg %p96
        %p417 = pneg %p120
        %p418 = pneg %p117
        %p419 = pneg %p141
        %p420 = pneg %p138
        %p421 = pneg %p162
        %p422 = pneg %p159
        %p423 = pneg %p183
        %p424 = pneg %p180
        %p425 = pneg %p204
        %p426 = pneg %p201
        %p427 = pneg %p230
        %p428 = pneg %p227
        %s429 = sand.u32 %s217, 1
        %s430 = scalar_lea.sflag [#allocation4], %s429
        %s431 = sand.u32 %s217, 1
        %s432 = smul.addr %s431, 8
        %s433 = scalar_lea.vmem [#allocation16], %s432
        %v435 = vld [vmem:[%s365] sm:$0xff]
        %v436 = vld [vmem:[%s373] sm:$0x1]
        %vm437 = vcmp.gt.f32.partialorder %v436, 0.5
        %v438 = vld [vmem:[#allocation7] sm:$0x1]
        %v439 = vld [vmem:[#allocation8] sm:$0x1]
        %vm440 = vcmask 261120
        %v441 = vsel %vm440, %v435, 0.0
        %442 = vadd.xlane.f32.xlu0 %v441
        %v443 = vpop.xlane.xlu0 %442
        %v444 = vrcp.pop 32.0
        %v445 = vmul.f32 %v443, %v444
        %v446 = vsub.f32 %v435, %v445
        %v447 = vmul.f32 %v446, %v446
        %v448 = vsel %vm440, %v447, 0.0
        %449 = vadd.xlane.f32.xlu0 %v448
        %v450 = vpop.xlane.xlu0 %449
        %v451 = vmul.f32 %v450, %v444
        %v452 = vadd.f32 %v451, 1e-05
        %v453 = vrsqrt.pop %v452
        %v454 = vmul.f32 %v446, %v453
        %v456 = vlaneseq
        %v457 = vshrl.u32 %v456, 7
        %v458 = vsub.s32 0, %v457
        %v459 = vrot.slane %v438, %v458
        %v461 = vmul.f32 %v454, %v459
        %v463 = vlaneseq
        %v464 = vshrl.u32 %v463, 7
        %v465 = vsub.s32 0, %v464
        %v466 = vrot.slane %v439, %v465
        %v468 = vadd.f32 %v461, %v466
        %v469 = vpack.c.bf16 %v468, %v468
        %v470 = vld [vmem:[#allocation10] sm:$0xf]
        %v471 = vld [vmem:[#allocation10 + $0x4] sm:$0xf]
        %v472 = vld [vmem:[#allocation10 + $0x8] sm:$0xf]
        %v473 = vld [vmem:[#allocation10 + $0xc] sm:$0xf]
        %v474 = vld [vmem:[#allocation11] sm:$0x1]
        %v476 = vlaneseq
        %v477 = vshrl.u32 %v476, 7
        %v478 = vsub.s32 0, %v477
        %v479 = vrot.slane %v474, %v478
        %v485 = vunpack.c.l.b16 %v470
        %v486 = vunpack.c.l.b16 %v471
        %v487 = vunpack.c.l.b16 %v472
        %v488 = vunpack.c.l.b16 %v473
        %v489 = vpack.c.b16 %v486, %v485
        %v490 = vpack.c.b16 %v488, %v487
        %v494 = vsel %vm440, %v469, 0
        %496 = vmatprep.subr.bf16.mxu0 0
        %497 = vmatpush1.bf16.msra.mxu0 %v489
        %498 = vmatprep.subr.bf16.mxu0 0
        %499 = vmatpush1.bf16.msra.mxu0 %v490
        %500 = vmatprep.subr.bf16.mxu0 0
        %501 = vmatpush1.bf16.msra.mxu0 0
        %502 = vmatprep.subr.bf16.mxu0 0
        %503 = vmatpush1.bf16.msra.mxu0 0
        %504 = vmatprep.subr.bf16.mxu0 0
        %505 = vmatpush1.bf16.msra.mxu0 0
        %506 = vmatprep.subr.bf16.mxu0 0
        %507 = vmatpush1.bf16.msra.mxu0 0
        %508 = vmatprep.subr.bf16.mxu0 0
        %509 = vmatpush1.bf16.msra.mxu0 0
        %510 = vmatprep.subr.bf16.mxu0 0
        %511 = vmatpush1.bf16.msra.mxu0 0
        %512 = vmatprep.subr.bf16.mxu0 0
        %513 = vmatpush1.bf16.msra.mxu0 0
        %514 = vmatprep.subr.bf16.mxu0 0
        %515 = vmatpush1.bf16.msra.mxu0 0
        %516 = vmatprep.subr.bf16.mxu0 0
        %517 = vmatpush1.bf16.msra.mxu0 0
        %518 = vmatprep.subr.bf16.mxu0 0
        %519 = vmatpush1.bf16.msra.mxu0 0
        %520 = vmatprep.subr.bf16.mxu0 0
        %521 = vmatpush1.bf16.msra.mxu0 0
        %522 = vmatprep.subr.bf16.mxu0 0
        %523 = vmatpush1.bf16.msra.mxu0 0
        %524 = vmatprep.subr.bf16.mxu0 0
        %525 = vmatpush1.bf16.msra.mxu0 0
        %526 = vmatprep.subr.bf16.mxu0 0
        %527 = vmatpush1.bf16.msra.mxu0 0
        %528 = vmatprep.mubr.bf16.mxu0 0
        %529 = vmatmul.mubr.bf16.gmra.mrb[0].mxu0 %v494
        %v530 = vpop.f32.mrb[0].mxu0
        %v531 = vadd.f32 %v479, %v530
        %v532 = vpop.f32.mrb[0].mxu0
        %v533 = vpop.f32.mrb[0].mxu0
        %v534 = vpop.f32.mrb[0].mxu0
        %535 = vdwg.mxu0
        %537 = vrot.lane.b32.xlu0 %v531, 120
        %v538 = vpop.permute.xlu0 %537
        %540 = vrot.lane.b32.xlu0 %v531, 112
        %v541 = vpop.permute.xlu0 %540
        %543 = vrot.lane.b32.xlu0 %v531, 104
        %v544 = vpop.permute.xlu0 %543
        %v546 = vcombine.low %v531, %v541
        %v547 = vcombine.high %v531, %v541
        %v549 = vunpack.c.l.s4 1983009808
        %v550 = vunpack.c.0.s8 %v549
        %v551 = vlaneseq
        %v552 = vshrl.u32 %v551, 7
        %v553 = vsub.s32 %v550, %v552
        %v554 = vrot.slane %v546, %v553
        %v556 = vunpack.c.l.s4 1983009808
        %v557 = vunpack.c.0.s8 %v556
        %v558 = vlaneseq
        %v559 = vshrl.u32 %v558, 7
        %v560 = vsub.s32 %v557, %v559
        %v561 = vrot.slane %v547, %v560
        %v562 = vcombine.low %v538, %v544
        %v563 = vcombine.high %v538, %v544
        %v565 = vunpack.c.l.s4 1983009808
        %v566 = vunpack.c.0.s8 %v565
        %v567 = vlaneseq
        %v568 = vshrl.u32 %v567, 7
        %v569 = vsub.s32 %v566, %v568
        %v570 = vrot.slane %v562, %v569
        %v572 = vunpack.c.l.s4 1983009808
        %v573 = vunpack.c.0.s8 %v572
        %v574 = vlaneseq
        %v575 = vshrl.u32 %v574, 7
        %v576 = vsub.s32 %v573, %v575
        %v577 = vrot.slane %v563, %v576
        %v578 = vcombine.low %v554, %v570
        %v579 = vcombine.high %v554, %v570
        %v581 = vunpack.c.l.s4 1934713408
        %v582 = vunpack.c.0.s8 %v581
        %v583 = vlaneseq
        %v584 = vshrl.u32 %v583, 7
        %v585 = vsub.s32 %v582, %v584
        %v586 = vrot.slane %v578, %v585
        %v588 = vunpack.c.l.s4 1934713408
        %v589 = vunpack.c.0.s8 %v588
        %v590 = vlaneseq
        %v591 = vshrl.u32 %v590, 7
        %v592 = vsub.s32 %v589, %v591
        %v593 = vrot.slane %v579, %v592
        %v594 = vcombine.low %v561, %v577
        %v595 = vcombine.high %v561, %v577
        %v597 = vunpack.c.l.s4 1934713408
        %v598 = vunpack.c.0.s8 %v597
        %v599 = vlaneseq
        %v600 = vshrl.u32 %v599, 7
        %v601 = vsub.s32 %v598, %v600
        %v602 = vrot.slane %v594, %v601
        %v604 = vunpack.c.l.s4 1934713408
        %v605 = vunpack.c.0.s8 %v604
        %v606 = vlaneseq
        %v607 = vshrl.u32 %v606, 7
        %v608 = vsub.s32 %v605, %v607
        %v609 = vrot.slane %v595, %v608
        %v610 = vcombine.high %v586, 0.0
        %v611 = vcombine.high %v593, 0.0
        %v612 = vcombine.high %v602, 0.0
        %v613 = vcombine.high %v609, 0.0
        %v614 = vcombine.low %v586, %v593
        %v616 = vunpack.c.l.s4 1983009808
        %v617 = vunpack.c.0.s8 %v616
        %v618 = vlaneseq
        %v619 = vshrl.u32 %v618, 7
        %v620 = vsub.s32 %v617, %v619
        %v621 = vrot.slane %v614, %v620
        %v622 = vcombine.low %v610, %v611
        %v624 = vunpack.c.l.s4 1983009808
        %v625 = vunpack.c.0.s8 %v624
        %v626 = vlaneseq
        %v627 = vshrl.u32 %v626, 7
        %v628 = vsub.s32 %v625, %v627
        %v629 = vrot.slane %v622, %v628
        %v630 = vcombine.low %v602, %v609
        %v632 = vunpack.c.l.s4 1983009808
        %v633 = vunpack.c.0.s8 %v632
        %v634 = vlaneseq
        %v635 = vshrl.u32 %v634, 7
        %v636 = vsub.s32 %v633, %v635
        %v637 = vrot.slane %v630, %v636
        %v638 = vcombine.low %v612, %v613
        %v640 = vunpack.c.l.s4 1983009808
        %v641 = vunpack.c.0.s8 %v640
        %v642 = vlaneseq
        %v643 = vshrl.u32 %v642, 7
        %v644 = vsub.s32 %v641, %v643
        %v645 = vrot.slane %v638, %v644
        %v646 = vcombine.low %v621, %v629
        %v647 = vcombine.high %v621, %v629
        %v649 = vunpack.c.l.s4 1934713408
        %v650 = vunpack.c.0.s8 %v649
        %v651 = vlaneseq
        %v652 = vshrl.u32 %v651, 7
        %v653 = vsub.s32 %v650, %v652
        %v654 = vrot.slane %v646, %v653
        %v656 = vunpack.c.l.s4 1934713408
        %v657 = vunpack.c.0.s8 %v656
        %v658 = vlaneseq
        %v659 = vshrl.u32 %v658, 7
        %v660 = vsub.s32 %v657, %v659
        %v661 = vrot.slane %v647, %v660
        %v662 = vcombine.low %v637, %v645
        %v663 = vcombine.high %v637, %v645
        %v665 = vunpack.c.l.s4 1934713408
        %v666 = vunpack.c.0.s8 %v665
        %v667 = vlaneseq
        %v668 = vshrl.u32 %v667, 7
        %v669 = vsub.s32 %v666, %v668
        %v670 = vrot.slane %v662, %v669
        %v672 = vunpack.c.l.s4 1934713408
        %v673 = vunpack.c.0.s8 %v672
        %v674 = vlaneseq
        %v675 = vshrl.u32 %v674, 7
        %v676 = vsub.s32 %v673, %v675
        %v677 = vrot.slane %v663, %v676
        %v678 = vcombine.low %v654, %v670
        %v679 = vcombine.high %v654, %v670
        %v680 = vcombine.low %v661, %v677
        %v681 = vcombine.high %v661, %v677
        %v682 = vpack.c.bf16 %v678, %v678
        %v683 = vpack.c.bf16 %v679, %v679
        %v684 = vpack.c.bf16 %v680, %v680
        %v685 = vpack.c.bf16 %v681, %v681
        %686 = vrot.lane.b32.xlu0 %v531, 96
        %v687 = vpop.permute.xlu0 %686
        %688 = vrot.lane.b32.xlu0 %v538, 96
        %v689 = vpop.permute.xlu0 %688
        %690 = vrot.lane.b32.xlu0 %v541, 96
        %v691 = vpop.permute.xlu0 %690
        %692 = vrot.lane.b32.xlu0 %v544, 96
        %v693 = vpop.permute.xlu0 %692
        %v698 = vcombine.low %v687, %v691
        %v699 = vcombine.high %v687, %v691
        %v701 = vunpack.c.l.s4 1983009808
        %v702 = vunpack.c.0.s8 %v701
        %v703 = vlaneseq
        %v704 = vshrl.u32 %v703, 7
        %v705 = vsub.s32 %v702, %v704
        %v706 = vrot.slane %v698, %v705
        %v708 = vunpack.c.l.s4 1983009808
        %v709 = vunpack.c.0.s8 %v708
        %v710 = vlaneseq
        %v711 = vshrl.u32 %v710, 7
        %v712 = vsub.s32 %v709, %v711
        %v713 = vrot.slane %v699, %v712
        %v714 = vcombine.low %v689, %v693
        %v715 = vcombine.high %v689, %v693
        %v717 = vunpack.c.l.s4 1983009808
        %v718 = vunpack.c.0.s8 %v717
        %v719 = vlaneseq
        %v720 = vshrl.u32 %v719, 7
        %v721 = vsub.s32 %v718, %v720
        %v722 = vrot.slane %v714, %v721
        %v724 = vunpack.c.l.s4 1983009808
        %v725 = vunpack.c.0.s8 %v724
        %v726 = vlaneseq
        %v727 = vshrl.u32 %v726, 7
        %v728 = vsub.s32 %v725, %v727
        %v729 = vrot.slane %v715, %v728
        %v730 = vcombine.low %v706, %v722
        %v731 = vcombine.high %v706, %v722
        %v733 = vunpack.c.l.s4 1934713408
        %v734 = vunpack.c.0.s8 %v733
        %v735 = vlaneseq
        %v736 = vshrl.u32 %v735, 7
        %v737 = vsub.s32 %v734, %v736
        %v738 = vrot.slane %v730, %v737
        %v740 = vunpack.c.l.s4 1934713408
        %v741 = vunpack.c.0.s8 %v740
        %v742 = vlaneseq
        %v743 = vshrl.u32 %v742, 7
        %v744 = vsub.s32 %v741, %v743
        %v745 = vrot.slane %v731, %v744
        %v746 = vcombine.low %v713, %v729
        %v747 = vcombine.high %v713, %v729
        %v749 = vunpack.c.l.s4 1934713408
        %v750 = vunpack.c.0.s8 %v749
        %v751 = vlaneseq
        %v752 = vshrl.u32 %v751, 7
        %v753 = vsub.s32 %v750, %v752
        %v754 = vrot.slane %v746, %v753
        %v756 = vunpack.c.l.s4 1934713408
        %v757 = vunpack.c.0.s8 %v756
        %v758 = vlaneseq
        %v759 = vshrl.u32 %v758, 7
        %v760 = vsub.s32 %v757, %v759
        %v761 = vrot.slane %v747, %v760
        %v762 = vcombine.high %v738, 0.0
        %v763 = vcombine.high %v745, 0.0
        %v764 = vcombine.high %v754, 0.0
        %v765 = vcombine.high %v761, 0.0
        %v766 = vcombine.low %v738, %v745
        %v768 = vunpack.c.l.s4 1983009808
        %v769 = vunpack.c.0.s8 %v768
        %v770 = vlaneseq
        %v771 = vshrl.u32 %v770, 7
        %v772 = vsub.s32 %v769, %v771
        %v773 = vrot.slane %v766, %v772
        %v774 = vcombine.low %v762, %v763
        %v776 = vunpack.c.l.s4 1983009808
        %v777 = vunpack.c.0.s8 %v776
        %v778 = vlaneseq
        %v779 = vshrl.u32 %v778, 7
        %v780 = vsub.s32 %v777, %v779
        %v781 = vrot.slane %v774, %v780
        %v782 = vcombine.low %v754, %v761
        %v784 = vunpack.c.l.s4 1983009808
        %v785 = vunpack.c.0.s8 %v784
        %v786 = vlaneseq
        %v787 = vshrl.u32 %v786, 7
        %v788 = vsub.s32 %v785, %v787
        %v789 = vrot.slane %v782, %v788
        %v790 = vcombine.low %v764, %v765
        %v792 = vunpack.c.l.s4 1983009808
        %v793 = vunpack.c.0.s8 %v792
        %v794 = vlaneseq
        %v795 = vshrl.u32 %v794, 7
        %v796 = vsub.s32 %v793, %v795
        %v797 = vrot.slane %v790, %v796
        %v798 = vcombine.low %v773, %v781
        %v799 = vcombine.high %v773, %v781
        %v801 = vunpack.c.l.s4 1934713408
        %v802 = vunpack.c.0.s8 %v801
        %v803 = vlaneseq
        %v804 = vshrl.u32 %v803, 7
        %v805 = vsub.s32 %v802, %v804
        %v806 = vrot.slane %v798, %v805
        %v808 = vunpack.c.l.s4 1934713408
        %v809 = vunpack.c.0.s8 %v808
        %v810 = vlaneseq
        %v811 = vshrl.u32 %v810, 7
        %v812 = vsub.s32 %v809, %v811
        %v813 = vrot.slane %v799, %v812
        %v814 = vcombine.low %v789, %v797
        %v815 = vcombine.high %v789, %v797
        %v817 = vunpack.c.l.s4 1934713408
        %v818 = vunpack.c.0.s8 %v817
        %v819 = vlaneseq
        %v820 = vshrl.u32 %v819, 7
        %v821 = vsub.s32 %v818, %v820
        %v822 = vrot.slane %v814, %v821
        %v824 = vunpack.c.l.s4 1934713408
        %v825 = vunpack.c.0.s8 %v824
        %v826 = vlaneseq
        %v827 = vshrl.u32 %v826, 7
        %v828 = vsub.s32 %v825, %v827
        %v829 = vrot.slane %v815, %v828
        %v830 = vcombine.low %v806, %v822
        %v831 = vcombine.high %v806, %v822
        %v832 = vcombine.low %v813, %v829
        %v833 = vcombine.high %v813, %v829
        %v834 = vpack.c.bf16 %v830, %v830
        %v835 = vpack.c.bf16 %v831, %v831
        %v836 = vpack.c.bf16 %v832, %v832
        %v837 = vpack.c.bf16 %v833, %v833
        %838 = vrot.lane.b32.xlu0 %v531, 64
        %v839 = vpop.permute.xlu0 %838
        %840 = vrot.lane.b32.xlu0 %v538, 64
        %v841 = vpop.permute.xlu0 %840
        %842 = vrot.lane.b32.xlu0 %v541, 64
        %v843 = vpop.permute.xlu0 %842
        %844 = vrot.lane.b32.xlu0 %v544, 64
        %v845 = vpop.permute.xlu0 %844
        %v850 = vcombine.low %v839, %v843
        %v851 = vcombine.high %v839, %v843
        %v853 = vunpack.c.l.s4 1983009808
        %v854 = vunpack.c.0.s8 %v853
        %v855 = vlaneseq
        %v856 = vshrl.u32 %v855, 7
        %v857 = vsub.s32 %v854, %v856
        %v858 = vrot.slane %v850, %v857
        %v860 = vunpack.c.l.s4 1983009808
        %v861 = vunpack.c.0.s8 %v860
        %v862 = vlaneseq
        %v863 = vshrl.u32 %v862, 7
        %v864 = vsub.s32 %v861, %v863
        %v865 = vrot.slane %v851, %v864
        %v866 = vcombine.low %v841, %v845
        %v867 = vcombine.high %v841, %v845
        %v869 = vunpack.c.l.s4 1983009808
        %v870 = vunpack.c.0.s8 %v869
        %v871 = vlaneseq
        %v872 = vshrl.u32 %v871, 7
        %v873 = vsub.s32 %v870, %v872
        %v874 = vrot.slane %v866, %v873
        %v876 = vunpack.c.l.s4 1983009808
        %v877 = vunpack.c.0.s8 %v876
        %v878 = vlaneseq
        %v879 = vshrl.u32 %v878, 7
        %v880 = vsub.s32 %v877, %v879
        %v881 = vrot.slane %v867, %v880
        %v882 = vcombine.low %v858, %v874
        %v883 = vcombine.high %v858, %v874
        %v885 = vunpack.c.l.s4 1934713408
        %v886 = vunpack.c.0.s8 %v885
        %v887 = vlaneseq
        %v888 = vshrl.u32 %v887, 7
        %v889 = vsub.s32 %v886, %v888
        %v890 = vrot.slane %v882, %v889
        %v892 = vunpack.c.l.s4 1934713408
        %v893 = vunpack.c.0.s8 %v892
        %v894 = vlaneseq
        %v895 = vshrl.u32 %v894, 7
        %v896 = vsub.s32 %v893, %v895
        %v897 = vrot.slane %v883, %v896
        %v898 = vcombine.low %v865, %v881
        %v899 = vcombine.high %v865, %v881
        %v901 = vunpack.c.l.s4 1934713408
        %v902 = vunpack.c.0.s8 %v901
        %v903 = vlaneseq
        %v904 = vshrl.u32 %v903, 7
        %v905 = vsub.s32 %v902, %v904
        %v906 = vrot.slane %v898, %v905
        %v908 = vunpack.c.l.s4 1934713408
        %v909 = vunpack.c.0.s8 %v908
        %v910 = vlaneseq
        %v911 = vshrl.u32 %v910, 7
        %v912 = vsub.s32 %v909, %v911
        %v913 = vrot.slane %v899, %v912
        %v914 = vcombine.high %v890, 0.0
        %v915 = vcombine.high %v897, 0.0
        %v916 = vcombine.high %v906, 0.0
        %v917 = vcombine.high %v913, 0.0
        %v918 = vcombine.low %v890, %v897
        %v920 = vunpack.c.l.s4 1983009808
        %v921 = vunpack.c.0.s8 %v920
        %v922 = vlaneseq
        %v923 = vshrl.u32 %v922, 7
        %v924 = vsub.s32 %v921, %v923
        %v925 = vrot.slane %v918, %v924
        %v926 = vcombine.low %v914, %v915
        %v928 = vunpack.c.l.s4 1983009808
        %v929 = vunpack.c.0.s8 %v928
        %v930 = vlaneseq
        %v931 = vshrl.u32 %v930, 7
        %v932 = vsub.s32 %v929, %v931
        %v933 = vrot.slane %v926, %v932
        %v934 = vcombine.low %v906, %v913
        %v936 = vunpack.c.l.s4 1983009808
        %v937 = vunpack.c.0.s8 %v936
        %v938 = vlaneseq
        %v939 = vshrl.u32 %v938, 7
        %v940 = vsub.s32 %v937, %v939
        %v941 = vrot.slane %v934, %v940
        %v942 = vcombine.low %v916, %v917
        %v944 = vunpack.c.l.s4 1983009808
        %v945 = vunpack.c.0.s8 %v944
        %v946 = vlaneseq
        %v947 = vshrl.u32 %v946, 7
        %v948 = vsub.s32 %v945, %v947
        %v949 = vrot.slane %v942, %v948
        %v950 = vcombine.low %v925, %v933
        %v951 = vcombine.high %v925, %v933
        %v953 = vunpack.c.l.s4 1934713408
        %v954 = vunpack.c.0.s8 %v953
        %v955 = vlaneseq
        %v956 = vshrl.u32 %v955, 7
        %v957 = vsub.s32 %v954, %v956
        %v958 = vrot.slane %v950, %v957
        %v960 = vunpack.c.l.s4 1934713408
        %v961 = vunpack.c.0.s8 %v960
        %v962 = vlaneseq
        %v963 = vshrl.u32 %v962, 7
        %v964 = vsub.s32 %v961, %v963
        %v965 = vrot.slane %v951, %v964
        %v966 = vcombine.low %v941, %v949
        %v967 = vcombine.high %v941, %v949
        %v969 = vunpack.c.l.s4 1934713408
        %v970 = vunpack.c.0.s8 %v969
        %v971 = vlaneseq
        %v972 = vshrl.u32 %v971, 7
        %v973 = vsub.s32 %v970, %v972
        %v974 = vrot.slane %v966, %v973
        %v976 = vunpack.c.l.s4 1934713408
        %v977 = vunpack.c.0.s8 %v976
        %v978 = vlaneseq
        %v979 = vshrl.u32 %v978, 7
        %v980 = vsub.s32 %v977, %v979
        %v981 = vrot.slane %v967, %v980
        %v982 = vcombine.low %v958, %v974
        %v983 = vcombine.high %v958, %v974
        %v984 = vcombine.low %v965, %v981
        %v985 = vcombine.high %v965, %v981
        %v986 = vpack.c.bf16 %v982, %v982
        %v987 = vpack.c.bf16 %v983, %v983
        %v988 = vpack.c.bf16 %v984, %v984
        %v989 = vpack.c.bf16 %v985, %v985
        %vm990 = vcmask 64512
        %v992 = vsel %vm990, %v682, 0
        %v995 = vsel %vm990, %v834, 0
        %997 = vmatprep.subr.bf16.mxu0 0
        %998 = vmatpush1.bf16.xpose.msra.mxu0 %v995
        %999 = vmatprep.subr.bf16.mxu0 0
        %1000 = vmatpush1.bf16.xpose.msra.mxu0 0
        %1001 = vmatprep.subr.bf16.mxu0 0
        %1002 = vmatpush1.bf16.xpose.msra.mxu0 0
        %1003 = vmatprep.subr.bf16.mxu0 0
        %1004 = vmatpush1.bf16.xpose.msra.mxu0 0
        %1005 = vmatprep.subr.bf16.mxu0 0
        %1006 = vmatpush1.bf16.xpose.msra.mxu0 0
        %1007 = vmatprep.subr.bf16.mxu0 0
        %1008 = vmatpush1.bf16.xpose.msra.mxu0 0
        %1009 = vmatprep.subr.bf16.mxu0 0
        %1010 = vmatpush1.bf16.xpose.msra.mxu0 0
        %1011 = vmatprep.subr.bf16.mxu0 0
        %1012 = vmatpush1.bf16.xpose.msra.mxu0 0
        %1013 = vmatprep.subr.bf16.mxu0 0
        %1014 = vmatpush1.bf16.xpose.msra.mxu0 0
        %1015 = vmatprep.subr.bf16.mxu0 0
        %1016 = vmatpush1.bf16.xpose.msra.mxu0 0
        %1017 = vmatprep.subr.bf16.mxu0 0
        %1018 = vmatpush1.bf16.xpose.msra.mxu0 0
        %1019 = vmatprep.subr.bf16.mxu0 0
        %1020 = vmatpush1.bf16.xpose.msra.mxu0 0
        %1021 = vmatprep.subr.bf16.mxu0 0
        %1022 = vmatpush1.bf16.xpose.msra.mxu0 0
        %1023 = vmatprep.subr.bf16.mxu0 0
        %1024 = vmatpush1.bf16.xpose.msra.mxu0 0
        %1025 = vmatprep.subr.bf16.mxu0 0
        %1026 = vmatpush1.bf16.xpose.msra.mxu0 0
        %1027 = vmatprep.subr.bf16.mxu0 0
        %1028 = vmatpush1.bf16.xpose.msra.mxu0 0
        %1029 = vmatprep.mubr.bf16.mxu0 0
        %1030 = vmatmul.mubr.bf16.gmra.mrb[0].mxu0 %v992
        %v1031 = vpop.f32.mrb[0].mxu0
        %v1032 = vadd.f32 0.0, %v1031
        %v1033 = vpop.f32.mrb[0].mxu0
        %v1034 = vpop.f32.mrb[0].mxu0
        %v1035 = vpop.f32.mrb[0].mxu0
        %1036 = vdwg.mxu0
        %v1038 = vsel %vm990, %v683, 0
        %v1041 = vsel %vm990, %v835, 0
        %1043 = vmatprep.subr.bf16.mxu0 0
        %1044 = vmatpush1.bf16.xpose.msra.mxu0 %v1041
        %1045 = vmatprep.subr.bf16.mxu0 0
        %1046 = vmatpush1.bf16.xpose.msra.mxu0 0
        %1047 = vmatprep.subr.bf16.mxu0 0
        %1048 = vmatpush1.bf16.xpose.msra.mxu0 0
        %1049 = vmatprep.subr.bf16.mxu0 0
        %1050 = vmatpush1.bf16.xpose.msra.mxu0 0
        %1051 = vmatprep.subr.bf16.mxu0 0
        %1052 = vmatpush1.bf16.xpose.msra.mxu0 0
        %1053 = vmatprep.subr.bf16.mxu0 0
        %1054 = vmatpush1.bf16.xpose.msra.mxu0 0
        %1055 = vmatprep.subr.bf16.mxu0 0
        %1056 = vmatpush1.bf16.xpose.msra.mxu0 0
        %1057 = vmatprep.subr.bf16.mxu0 0
        %1058 = vmatpush1.bf16.xpose.msra.mxu0 0
        %1059 = vmatprep.subr.bf16.mxu0 0
        %1060 = vmatpush1.bf16.xpose.msra.mxu0 0
        %1061 = vmatprep.subr.bf16.mxu0 0
        %1062 = vmatpush1.bf16.xpose.msra.mxu0 0
        %1063 = vmatprep.subr.bf16.mxu0 0
        %1064 = vmatpush1.bf16.xpose.msra.mxu0 0
        %1065 = vmatprep.subr.bf16.mxu0 0
        %1066 = vmatpush1.bf16.xpose.msra.mxu0 0
        %1067 = vmatprep.subr.bf16.mxu0 0
        %1068 = vmatpush1.bf16.xpose.msra.mxu0 0
        %1069 = vmatprep.subr.bf16.mxu0 0
        %1070 = vmatpush1.bf16.xpose.msra.mxu0 0
        %1071 = vmatprep.subr.bf16.mxu0 0
        %1072 = vmatpush1.bf16.xpose.msra.mxu0 0
        %1073 = vmatprep.subr.bf16.mxu0 0
        %1074 = vmatpush1.bf16.xpose.msra.mxu0 0
        %1075 = vmatprep.mubr.bf16.mxu0 0
        %1076 = vmatmul.mubr.bf16.gmra.mrb[0].mxu0 %v1038
        %v1077 = vpop.f32.mrb[0].mxu0
        %v1078 = vadd.f32 0.0, %v1077
        %v1079 = vpop.f32.mrb[0].mxu0
        %v1080 = vpop.f32.mrb[0].mxu0
        %v1081 = vpop.f32.mrb[0].mxu0
        %1082 = vdwg.mxu0
        %v1084 = vsel %vm990, %v684, 0
        %v1087 = vsel %vm990, %v836, 0
        %1089 = vmatprep.subr.bf16.mxu0 0
        %1090 = vmatpush1.bf16.xpose.msra.mxu0 %v1087
        %1091 = vmatprep.subr.bf16.mxu0 0
        %1092 = vmatpush1.bf16.xpose.msra.mxu0 0
        %1093 = vmatprep.subr.bf16.mxu0 0
        %1094 = vmatpush1.bf16.xpose.msra.mxu0 0
        %1095 = vmatprep.subr.bf16.mxu0 0
        %1096 = vmatpush1.bf16.xpose.msra.mxu0 0
        %1097 = vmatprep.subr.bf16.mxu0 0
        %1098 = vmatpush1.bf16.xpose.msra.mxu0 0
        %1099 = vmatprep.subr.bf16.mxu0 0
        %1100 = vmatpush1.bf16.xpose.msra.mxu0 0
        %1101 = vmatprep.subr.bf16.mxu0 0
        %1102 = vmatpush1.bf16.xpose.msra.mxu0 0
        %1103 = vmatprep.subr.bf16.mxu0 0
        %1104 = vmatpush1.bf16.xpose.msra.mxu0 0
        %1105 = vmatprep.subr.bf16.mxu0 0
        %1106 = vmatpush1.bf16.xpose.msra.mxu0 0
        %1107 = vmatprep.subr.bf16.mxu0 0
        %1108 = vmatpush1.bf16.xpose.msra.mxu0 0
        %1109 = vmatprep.subr.bf16.mxu0 0
        %1110 = vmatpush1.bf16.xpose.msra.mxu0 0
        %1111 = vmatprep.subr.bf16.mxu0 0
        %1112 = vmatpush1.bf16.xpose.msra.mxu0 0
        %1113 = vmatprep.subr.bf16.mxu0 0
        %1114 = vmatpush1.bf16.xpose.msra.mxu0 0
        %1115 = vmatprep.subr.bf16.mxu0 0
        %1116 = vmatpush1.bf16.xpose.msra.mxu0 0
        %1117 = vmatprep.subr.bf16.mxu0 0
        %1118 = vmatpush1.bf16.xpose.msra.mxu0 0
        %1119 = vmatprep.subr.bf16.mxu0 0
        %1120 = vmatpush1.bf16.xpose.msra.mxu0 0
        %1121 = vmatprep.mubr.bf16.mxu0 0
        %1122 = vmatmul.mubr.bf16.gmra.mrb[0].mxu0 %v1084
        %v1123 = vpop.f32.mrb[0].mxu0
        %v1124 = vadd.f32 0.0, %v1123
        %v1125 = vpop.f32.mrb[0].mxu0
        %v1126 = vpop.f32.mrb[0].mxu0
        %v1127 = vpop.f32.mrb[0].mxu0
        %1128 = vdwg.mxu0
        %v1130 = vsel %vm990, %v685, 0
        %v1133 = vsel %vm990, %v837, 0
        %1135 = vmatprep.subr.bf16.mxu0 0
        %1136 = vmatpush1.bf16.xpose.msra.mxu0 %v1133
        %1137 = vmatprep.subr.bf16.mxu0 0
        %1138 = vmatpush1.bf16.xpose.msra.mxu0 0
        %1139 = vmatprep.subr.bf16.mxu0 0
        %1140 = vmatpush1.bf16.xpose.msra.mxu0 0
        %1141 = vmatprep.subr.bf16.mxu0 0
        %1142 = vmatpush1.bf16.xpose.msra.mxu0 0
        %1143 = vmatprep.subr.bf16.mxu0 0
        %1144 = vmatpush1.bf16.xpose.msra.mxu0 0
        %1145 = vmatprep.subr.bf16.mxu0 0
        %1146 = vmatpush1.bf16.xpose.msra.mxu0 0
        %1147 = vmatprep.subr.bf16.mxu0 0
        %1148 = vmatpush1.bf16.xpose.msra.mxu0 0
        %1149 = vmatprep.subr.bf16.mxu0 0
        %1150 = vmatpush1.bf16.xpose.msra.mxu0 0
        %1151 = vmatprep.subr.bf16.mxu0 0
        %1152 = vmatpush1.bf16.xpose.msra.mxu0 0
        %1153 = vmatprep.subr.bf16.mxu0 0
        %1154 = vmatpush1.bf16.xpose.msra.mxu0 0
        %1155 = vmatprep.subr.bf16.mxu0 0
        %1156 = vmatpush1.bf16.xpose.msra.mxu0 0
        %1157 = vmatprep.subr.bf16.mxu0 0
        %1158 = vmatpush1.bf16.xpose.msra.mxu0 0
        %1159 = vmatprep.subr.bf16.mxu0 0
        %1160 = vmatpush1.bf16.xpose.msra.mxu0 0
        %1161 = vmatprep.subr.bf16.mxu0 0
        %1162 = vmatpush1.bf16.xpose.msra.mxu0 0
        %1163 = vmatprep.subr.bf16.mxu0 0
        %1164 = vmatpush1.bf16.xpose.msra.mxu0 0
        %1165 = vmatprep.subr.bf16.mxu0 0
        %1166 = vmatpush1.bf16.xpose.msra.mxu0 0
        %1167 = vmatprep.mubr.bf16.mxu0 0
        %1168 = vmatmul.mubr.bf16.gmra.mrb[0].mxu0 %v1130
        %v1169 = vpop.f32.mrb[0].mxu0
        %v1170 = vadd.f32 0.0, %v1169
        %v1171 = vpop.f32.mrb[0].mxu0
        %v1172 = vpop.f32.mrb[0].mxu0
        %v1173 = vpop.f32.mrb[0].mxu0
        %1174 = vdwg.mxu0
        %v1175 = vmul.f32 %v1032, 0.35355338
        %v1176 = vmul.f32 %v1078, 0.35355338
        %v1177 = vmul.f32 %v1124, 0.35355338
        %v1178 = vmul.f32 %v1170, 0.35355338
        %v1179 = vlaneseq
        %v1180 = vshrl.u32 %v1179, 7
        %v1181 = vlaneseq
        %v1182 = vand.u32 %v1181, 127
        %vm1183 = vcmp.ge.s32.totalorder %v1180, %v1182
        %v1184 = vsel %vm437, 1, 0
        %v1185 = vlaneseq
        %v1186 = vshrl.u32 %v1185, 7
        %v1187 = vsub.s32 0, %v1186
        %v1188 = vrot.slane %v1184, %v1187
        %vm1189 = vcmp.eq.s32.totalorder %v1188, 1
        %vm1190 = vmand %vm1183, %vm1189
        %v1191 = vsel %vm1190, 1, 0
        %vm1192 = vcmp.eq.s32.totalorder %v1191, 1
        %v1193 = vsel %vm1192, %v1175, -1e+09
        %v1194 = vsel %vm1192, %v1176, -1e+09
        %v1195 = vsel %vm1192, %v1177, -1e+09
        %v1196 = vsel %vm1192, %v1178, -1e+09
        %v1197 = vsel %vm990, %v1193, -inf
        %1198 = vmax.xlane.f32.xlu0 %v1197
        %v1199 = vpop.xlane.xlu0 %1198
        %v1200 = vsel %vm990, %v1194, -inf
        %1201 = vmax.xlane.f32.xlu0 %v1200
        %v1202 = vpop.xlane.xlu0 %1201
        %v1203 = vsel %vm990, %v1195, -inf
        %1204 = vmax.xlane.f32.xlu0 %v1203
        %v1205 = vpop.xlane.xlu0 %1204
        %v1206 = vsel %vm990, %v1196, -inf
        %1207 = vmax.xlane.f32.xlu0 %v1206
        %v1208 = vpop.xlane.xlu0 %1207
        %v1209 = vsub.f32 %v1193, %v1199
        %v1210 = vsub.f32 %v1194, %v1202
        %v1211 = vsub.f32 %v1195, %v1205
        %v1212 = vsub.f32 %v1196, %v1208
        %v1213 = vmul.f32 %v1209, 1.442695
        %v1214 = vpow.pop %v1213
        %v1215 = vmul.f32 %v1210, 1.442695
        %v1216 = vpow.pop %v1215
        %v1217 = vmul.f32 %v1211, 1.442695
        %v1218 = vpow.pop %v1217
        %v1219 = vmul.f32 %v1212, 1.442695
        %v1220 = vpow.pop %v1219
        %v1221 = vsel %vm990, %v1214, 0.0
        %1222 = vadd.xlane.f32.xlu0 %v1221
        %v1223 = vpop.xlane.xlu0 %1222
        %v1224 = vsel %vm990, %v1216, 0.0
        %1225 = vadd.xlane.f32.xlu0 %v1224
        %v1226 = vpop.xlane.xlu0 %1225
        %v1227 = vsel %vm990, %v1218, 0.0
        %1228 = vadd.xlane.f32.xlu0 %v1227
        %v1229 = vpop.xlane.xlu0 %1228
        %v1230 = vsel %vm990, %v1220, 0.0
        %1231 = vadd.xlane.f32.xlu0 %v1230
        %v1232 = vpop.xlane.xlu0 %1231
        %v1233 = vrcp.pop %v1223
        %v1234 = vrcp.pop %v1226
        %v1235 = vrcp.pop %v1229
        %v1236 = vrcp.pop %v1232
        %v1237 = vmul.f32 %v1214, %v1233
        %v1238 = vmul.f32 %v1216, %v1234
        %v1239 = vmul.f32 %v1218, %v1235
        %v1240 = vmul.f32 %v1220, %v1236
        %v1241 = vpack.c.bf16 %v1237, %v1237
        %v1242 = vpack.c.bf16 %v1238, %v1238
        %v1243 = vpack.c.bf16 %v1239, %v1239
        %v1244 = vpack.c.bf16 %v1240, %v1240
        %v1246 = vsel %vm990, %v1241, 0
        %vm1248 = vcmask 1043456
        %v1250 = vsel %vm1248, %v986, 0
        %1252 = vmatprep.subr.bf16.mxu0 0
        %1253 = vmatpush1.bf16.msra.mxu0 %v1250
        %1254 = vmatprep.subr.bf16.mxu0 0
        %1255 = vmatpush1.bf16.msra.mxu0 0
        %1256 = vmatprep.subr.bf16.mxu0 0
        %1257 = vmatpush1.bf16.msra.mxu0 0
        %1258 = vmatprep.subr.bf16.mxu0 0
        %1259 = vmatpush1.bf16.msra.mxu0 0
        %1260 = vmatprep.subr.bf16.mxu0 0
        %1261 = vmatpush1.bf16.msra.mxu0 0
        %1262 = vmatprep.subr.bf16.mxu0 0
        %1263 = vmatpush1.bf16.msra.mxu0 0
        %1264 = vmatprep.subr.bf16.mxu0 0
        %1265 = vmatpush1.bf16.msra.mxu0 0
        %1266 = vmatprep.subr.bf16.mxu0 0
        %1267 = vmatpush1.bf16.msra.mxu0 0
        %1268 = vmatprep.subr.bf16.mxu0 0
        %1269 = vmatpush1.bf16.msra.mxu0 0
        %1270 = vmatprep.subr.bf16.mxu0 0
        %1271 = vmatpush1.bf16.msra.mxu0 0
        %1272 = vmatprep.subr.bf16.mxu0 0
        %1273 = vmatpush1.bf16.msra.mxu0 0
        %1274 = vmatprep.subr.bf16.mxu0 0
        %1275 = vmatpush1.bf16.msra.mxu0 0
        %1276 = vmatprep.subr.bf16.mxu0 0
        %1277 = vmatpush1.bf16.msra.mxu0 0
        %1278 = vmatprep.subr.bf16.mxu0 0
        %1279 = vmatpush1.bf16.msra.mxu0 0
        %1280 = vmatprep.subr.bf16.mxu0 0
        %1281 = vmatpush1.bf16.msra.mxu0 0
        %1282 = vmatprep.subr.bf16.mxu0 0
        %1283 = vmatpush1.bf16.msra.mxu0 0
        %1284 = vmatprep.mubr.bf16.mxu0 0
        %1285 = vmatmul.mubr.bf16.gmra.mrb[0].mxu0 %v1246
        %v1286 = vpop.f32.mrb[0].mxu0
        %v1287 = vadd.f32 0.0, %v1286
        %v1288 = vpop.f32.mrb[0].mxu0
        %v1289 = vpop.f32.mrb[0].mxu0
        %v1290 = vpop.f32.mrb[0].mxu0
        %1291 = vdwg.mxu0
        %v1293 = vsel %vm990, %v1242, 0
        %v1296 = vsel %vm1248, %v987, 0
        %1298 = vmatprep.subr.bf16.mxu0 0
        %1299 = vmatpush1.bf16.msra.mxu0 %v1296
        %1300 = vmatprep.subr.bf16.mxu0 0
        %1301 = vmatpush1.bf16.msra.mxu0 0
        %1302 = vmatprep.subr.bf16.mxu0 0
        %1303 = vmatpush1.bf16.msra.mxu0 0
        %1304 = vmatprep.subr.bf16.mxu0 0
        %1305 = vmatpush1.bf16.msra.mxu0 0
        %1306 = vmatprep.subr.bf16.mxu0 0
        %1307 = vmatpush1.bf16.msra.mxu0 0
        %1308 = vmatprep.subr.bf16.mxu0 0
        %1309 = vmatpush1.bf16.msra.mxu0 0
        %1310 = vmatprep.subr.bf16.mxu0 0
        %1311 = vmatpush1.bf16.msra.mxu0 0
        %1312 = vmatprep.subr.bf16.mxu0 0
        %1313 = vmatpush1.bf16.msra.mxu0 0
        %1314 = vmatprep.subr.bf16.mxu0 0
        %1315 = vmatpush1.bf16.msra.mxu0 0
        %1316 = vmatprep.subr.bf16.mxu0 0
        %1317 = vmatpush1.bf16.msra.mxu0 0
        %1318 = vmatprep.subr.bf16.mxu0 0
        %1319 = vmatpush1.bf16.msra.mxu0 0
        %1320 = vmatprep.subr.bf16.mxu0 0
        %1321 = vmatpush1.bf16.msra.mxu0 0
        %1322 = vmatprep.subr.bf16.mxu0 0
        %1323 = vmatpush1.bf16.msra.mxu0 0
        %1324 = vmatprep.subr.bf16.mxu0 0
        %1325 = vmatpush1.bf16.msra.mxu0 0
        %1326 = vmatprep.subr.bf16.mxu0 0
        %1327 = vmatpush1.bf16.msra.mxu0 0
        %1328 = vmatprep.subr.bf16.mxu0 0
        %1329 = vmatpush1.bf16.msra.mxu0 0
        %1330 = vmatprep.mubr.bf16.mxu0 0
        %1331 = vmatmul.mubr.bf16.gmra.mrb[0].mxu0 %v1293
        %v1332 = vpop.f32.mrb[0].mxu0
        %v1333 = vadd.f32 0.0, %v1332
        %v1334 = vpop.f32.mrb[0].mxu0
        %v1335 = vpop.f32.mrb[0].mxu0
        %v1336 = vpop.f32.mrb[0].mxu0
        %1337 = vdwg.mxu0
        %v1339 = vsel %vm990, %v1243, 0
        %v1342 = vsel %vm1248, %v988, 0
        %1344 = vmatprep.subr.bf16.mxu0 0
        %1345 = vmatpush1.bf16.msra.mxu0 %v1342
        %1346 = vmatprep.subr.bf16.mxu0 0
        %1347 = vmatpush1.bf16.msra.mxu0 0
        %1348 = vmatprep.subr.bf16.mxu0 0
        %1349 = vmatpush1.bf16.msra.mxu0 0
        %1350 = vmatprep.subr.bf16.mxu0 0
        %1351 = vmatpush1.bf16.msra.mxu0 0
        %1352 = vmatprep.subr.bf16.mxu0 0
        %1353 = vmatpush1.bf16.msra.mxu0 0
        %1354 = vmatprep.subr.bf16.mxu0 0
        %1355 = vmatpush1.bf16.msra.mxu0 0
        %1356 = vmatprep.subr.bf16.mxu0 0
        %1357 = vmatpush1.bf16.msra.mxu0 0
        %1358 = vmatprep.subr.bf16.mxu0 0
        %1359 = vmatpush1.bf16.msra.mxu0 0
        %1360 = vmatprep.subr.bf16.mxu0 0
        %1361 = vmatpush1.bf16.msra.mxu0 0
        %1362 = vmatprep.subr.bf16.mxu0 0
        %1363 = vmatpush1.bf16.msra.mxu0 0
        %1364 = vmatprep.subr.bf16.mxu0 0
        %1365 = vmatpush1.bf16.msra.mxu0 0
        %1366 = vmatprep.subr.bf16.mxu0 0
        %1367 = vmatpush1.bf16.msra.mxu0 0
        %1368 = vmatprep.subr.bf16.mxu0 0
        %1369 = vmatpush1.bf16.msra.mxu0 0
        %1370 = vmatprep.subr.bf16.mxu0 0
        %1371 = vmatpush1.bf16.msra.mxu0 0
        %1372 = vmatprep.subr.bf16.mxu0 0
        %1373 = vmatpush1.bf16.msra.mxu0 0
        %1374 = vmatprep.subr.bf16.mxu0 0
        %1375 = vmatpush1.bf16.msra.mxu0 0
        %1376 = vmatprep.mubr.bf16.mxu0 0
        %1377 = vmatmul.mubr.bf16.gmra.mrb[0].mxu0 %v1339
        %v1378 = vpop.f32.mrb[0].mxu0
        %v1379 = vadd.f32 0.0, %v1378
        %v1380 = vpop.f32.mrb[0].mxu0
        %v1381 = vpop.f32.mrb[0].mxu0
        %v1382 = vpop.f32.mrb[0].mxu0
        %1383 = vdwg.mxu0
        %v1385 = vsel %vm990, %v1244, 0
        %v1388 = vsel %vm1248, %v989, 0
        %1390 = vmatprep.subr.bf16.mxu0 0
        %1391 = vmatpush1.bf16.msra.mxu0 %v1388
        %1392 = vmatprep.subr.bf16.mxu0 0
        %1393 = vmatpush1.bf16.msra.mxu0 0
        %1394 = vmatprep.subr.bf16.mxu0 0
        %1395 = vmatpush1.bf16.msra.mxu0 0
        %1396 = vmatprep.subr.bf16.mxu0 0
        %1397 = vmatpush1.bf16.msra.mxu0 0
        %1398 = vmatprep.subr.bf16.mxu0 0
        %1399 = vmatpush1.bf16.msra.mxu0 0
        %1400 = vmatprep.subr.bf16.mxu0 0
        %1401 = vmatpush1.bf16.msra.mxu0 0
        %1402 = vmatprep.subr.bf16.mxu0 0
        %1403 = vmatpush1.bf16.msra.mxu0 0
        %1404 = vmatprep.subr.bf16.mxu0 0
        %1405 = vmatpush1.bf16.msra.mxu0 0
        %1406 = vmatprep.subr.bf16.mxu0 0
        %1407 = vmatpush1.bf16.msra.mxu0 0
        %1408 = vmatprep.subr.bf16.mxu0 0
        %1409 = vmatpush1.bf16.msra.mxu0 0
        %1410 = vmatprep.subr.bf16.mxu0 0
        %1411 = vmatpush1.bf16.msra.mxu0 0
        %1412 = vmatprep.subr.bf16.mxu0 0
        %1413 = vmatpush1.bf16.msra.mxu0 0
        %1414 = vmatprep.subr.bf16.mxu0 0
        %1415 = vmatpush1.bf16.msra.mxu0 0
        %1416 = vmatprep.subr.bf16.mxu0 0
        %1417 = vmatpush1.bf16.msra.mxu0 0
        %1418 = vmatprep.subr.bf16.mxu0 0
        %1419 = vmatpush1.bf16.msra.mxu0 0
        %1420 = vmatprep.subr.bf16.mxu0 0
        %1421 = vmatpush1.bf16.msra.mxu0 0
        %1422 = vmatprep.mubr.bf16.mxu0 0
        %1423 = vmatmul.mubr.bf16.gmra.mrb[0].mxu0 %v1385
        %v1424 = vpop.f32.mrb[0].mxu0
        %v1425 = vadd.f32 0.0, %v1424
        %v1426 = vpop.f32.mrb[0].mxu0
        %v1427 = vpop.f32.mrb[0].mxu0
        %v1428 = vpop.f32.mrb[0].mxu0
        %1429 = vdwg.mxu0
        %v1430 = vcombine.low %v1287, %v1379
        %v1431 = vcombine.high %v1287, %v1379
        %v1433 = vunpack.c.l.s4 1983009808
        %v1434 = vunpack.c.0.s8 %v1433
        %v1435 = vlaneseq
        %v1436 = vshrl.u32 %v1435, 7
        %v1437 = vsub.s32 %v1434, %v1436
        %v1438 = vrot.slane %v1430, %v1437
        %v1440 = vunpack.c.l.s4 1983009808
        %v1441 = vunpack.c.0.s8 %v1440
        %v1442 = vlaneseq
        %v1443 = vshrl.u32 %v1442, 7
        %v1444 = vsub.s32 %v1441, %v1443
        %v1445 = vrot.slane %v1431, %v1444
        %v1446 = vcombine.low %v1333, %v1425
        %v1447 = vcombine.high %v1333, %v1425
        %v1449 = vunpack.c.l.s4 1983009808
        %v1450 = vunpack.c.0.s8 %v1449
        %v1451 = vlaneseq
        %v1452 = vshrl.u32 %v1451, 7
        %v1453 = vsub.s32 %v1450, %v1452
        %v1454 = vrot.slane %v1446, %v1453
        %v1456 = vunpack.c.l.s4 1983009808
        %v1457 = vunpack.c.0.s8 %v1456
        %v1458 = vlaneseq
        %v1459 = vshrl.u32 %v1458, 7
        %v1460 = vsub.s32 %v1457, %v1459
        %v1461 = vrot.slane %v1447, %v1460
        %v1462 = vcombine.low %v1438, %v1454
        %v1463 = vcombine.high %v1438, %v1454
        %v1465 = vunpack.c.l.s4 1934713408
        %v1466 = vunpack.c.0.s8 %v1465
        %v1467 = vlaneseq
        %v1468 = vshrl.u32 %v1467, 7
        %v1469 = vsub.s32 %v1466, %v1468
        %v1470 = vrot.slane %v1462, %v1469
        %v1472 = vunpack.c.l.s4 1934713408
        %v1473 = vunpack.c.0.s8 %v1472
        %v1474 = vlaneseq
        %v1475 = vshrl.u32 %v1474, 7
        %v1476 = vsub.s32 %v1473, %v1475
        %v1477 = vrot.slane %v1463, %v1476
        %v1478 = vcombine.low %v1445, %v1461
        %v1479 = vcombine.high %v1445, %v1461
        %v1481 = vunpack.c.l.s4 1934713408
        %v1482 = vunpack.c.0.s8 %v1481
        %v1483 = vlaneseq
        %v1484 = vshrl.u32 %v1483, 7
        %v1485 = vsub.s32 %v1482, %v1484
        %v1486 = vrot.slane %v1478, %v1485
        %v1488 = vunpack.c.l.s4 1934713408
        %v1489 = vunpack.c.0.s8 %v1488
        %v1490 = vlaneseq
        %v1491 = vshrl.u32 %v1490, 7
        %v1492 = vsub.s32 %v1489, %v1491
        %v1493 = vrot.slane %v1479, %v1492
        %v1494 = vcombine.high %v1470, 0.0
        %v1495 = vcombine.high %v1477, 0.0
        %v1496 = vcombine.high %v1486, 0.0
        %v1497 = vcombine.high %v1493, 0.0
        %v1498 = vcombine.low %v1470, %v1477
        %v1500 = vunpack.c.l.s4 1983009808
        %v1501 = vunpack.c.0.s8 %v1500
        %v1502 = vlaneseq
        %v1503 = vshrl.u32 %v1502, 7
        %v1504 = vsub.s32 %v1501, %v1503
        %v1505 = vrot.slane %v1498, %v1504
        %v1506 = vcombine.low %v1494, %v1495
        %v1508 = vunpack.c.l.s4 1983009808
        %v1509 = vunpack.c.0.s8 %v1508
        %v1510 = vlaneseq
        %v1511 = vshrl.u32 %v1510, 7
        %v1512 = vsub.s32 %v1509, %v1511
        %v1513 = vrot.slane %v1506, %v1512
        %v1514 = vcombine.low %v1486, %v1493
        %v1516 = vunpack.c.l.s4 1983009808
        %v1517 = vunpack.c.0.s8 %v1516
        %v1518 = vlaneseq
        %v1519 = vshrl.u32 %v1518, 7
        %v1520 = vsub.s32 %v1517, %v1519
        %v1521 = vrot.slane %v1514, %v1520
        %v1522 = vcombine.low %v1496, %v1497
        %v1524 = vunpack.c.l.s4 1983009808
        %v1525 = vunpack.c.0.s8 %v1524
        %v1526 = vlaneseq
        %v1527 = vshrl.u32 %v1526, 7
        %v1528 = vsub.s32 %v1525, %v1527
        %v1529 = vrot.slane %v1522, %v1528
        %v1530 = vcombine.low %v1505, %v1513
        %v1531 = vcombine.high %v1505, %v1513
        %v1533 = vunpack.c.l.s4 1934713408
        %v1534 = vunpack.c.0.s8 %v1533
        %v1535 = vlaneseq
        %v1536 = vshrl.u32 %v1535, 7
        %v1537 = vsub.s32 %v1534, %v1536
        %v1538 = vrot.slane %v1530, %v1537
        %v1540 = vunpack.c.l.s4 1934713408
        %v1541 = vunpack.c.0.s8 %v1540
        %v1542 = vlaneseq
        %v1543 = vshrl.u32 %v1542, 7
        %v1544 = vsub.s32 %v1541, %v1543
        %v1545 = vrot.slane %v1531, %v1544
        %v1546 = vcombine.low %v1521, %v1529
        %v1547 = vcombine.high %v1521, %v1529
        %v1549 = vunpack.c.l.s4 1934713408
        %v1550 = vunpack.c.0.s8 %v1549
        %v1551 = vlaneseq
        %v1552 = vshrl.u32 %v1551, 7
        %v1553 = vsub.s32 %v1550, %v1552
        %v1554 = vrot.slane %v1546, %v1553
        %v1556 = vunpack.c.l.s4 1934713408
        %v1557 = vunpack.c.0.s8 %v1556
        %v1558 = vlaneseq
        %v1559 = vshrl.u32 %v1558, 7
        %v1560 = vsub.s32 %v1557, %v1559
        %v1561 = vrot.slane %v1547, %v1560
        %v1562 = vcombine.low %v1538, %v1554
        %v1563 = vcombine.high %v1538, %v1554
        %v1564 = vcombine.low %v1545, %v1561
        %v1565 = vcombine.high %v1545, %v1561
        %1567 = vrot.lane.b32.xlu0 %v1563, 8
        %v1568 = vpop.permute.xlu0 %1567
        %1571 = vrot.lane.b32.xlu0 %v1564, 16
        %v1572 = vpop.permute.xlu0 %1571
        %1575 = vrot.lane.b32.xlu0 %v1565, 24
        %v1576 = vpop.permute.xlu0 %1575
        %v1578 = vsel %vm990, %v1562, %v1568
        %vm1579 = vcmask 130048
        %v1580 = vsel %vm1579, %v1578, %v1572
        %vm1581 = vcmask 195584
        %v1582 = vsel %vm1581, %v1580, %v1576
        %v1583 = vpack.c.bf16 %v1582, %v1582
        %v1584 = vld [vmem:[#allocation13] sm:$0xf]
        %v1585 = vld [vmem:[#allocation13 + $0x4] sm:$0xf]
        %v1586 = vld [vmem:[#allocation13 + $0x8] sm:$0xf]
        %v1587 = vld [vmem:[#allocation13 + $0xc] sm:$0xf]
        %v1588 = vld [vmem:[#allocation14] sm:$0x1]
        %v1590 = vlaneseq
        %v1591 = vshrl.u32 %v1590, 7
        %v1592 = vsub.s32 0, %v1591
        %v1593 = vrot.slane %v1588, %v1592
        %v1599 = vunpack.c.l.b16 %v1584
        %v1600 = vunpack.c.l.b16 %v1585
        %v1601 = vunpack.c.l.b16 %v1586
        %v1602 = vunpack.c.l.b16 %v1587
        %v1603 = vpack.c.b16 %v1600, %v1599
        %v1604 = vpack.c.b16 %v1602, %v1601
        %v1608 = vsel %vm440, %v1583, 0
        %1610 = vmatprep.subr.bf16.mxu0 0
        %1611 = vmatpush1.bf16.msra.mxu0 %v1603
        %1612 = vmatprep.subr.bf16.mxu0 0
        %1613 = vmatpush1.bf16.msra.mxu0 %v1604
        %1614 = vmatprep.subr.bf16.mxu0 0
        %1615 = vmatpush1.bf16.msra.mxu0 0
        %1616 = vmatprep.subr.bf16.mxu0 0
        %1617 = vmatpush1.bf16.msra.mxu0 0
        %1618 = vmatprep.subr.bf16.mxu0 0
        %1619 = vmatpush1.bf16.msra.mxu0 0
        %1620 = vmatprep.subr.bf16.mxu0 0
        %1621 = vmatpush1.bf16.msra.mxu0 0
        %1622 = vmatprep.subr.bf16.mxu0 0
        %1623 = vmatpush1.bf16.msra.mxu0 0
        %1624 = vmatprep.subr.bf16.mxu0 0
        %1625 = vmatpush1.bf16.msra.mxu0 0
        %1626 = vmatprep.subr.bf16.mxu0 0
        %1627 = vmatpush1.bf16.msra.mxu0 0
        %1628 = vmatprep.subr.bf16.mxu0 0
        %1629 = vmatpush1.bf16.msra.mxu0 0
        %1630 = vmatprep.subr.bf16.mxu0 0
        %1631 = vmatpush1.bf16.msra.mxu0 0
        %1632 = vmatprep.subr.bf16.mxu0 0
        %1633 = vmatpush1.bf16.msra.mxu0 0
        %1634 = vmatprep.subr.bf16.mxu0 0
        %1635 = vmatpush1.bf16.msra.mxu0 0
        %1636 = vmatprep.subr.bf16.mxu0 0
        %1637 = vmatpush1.bf16.msra.mxu0 0
        %1638 = vmatprep.subr.bf16.mxu0 0
        %1639 = vmatpush1.bf16.msra.mxu0 0
        %1640 = vmatprep.subr.bf16.mxu0 0
        %1641 = vmatpush1.bf16.msra.mxu0 0
        %1642 = vmatprep.mubr.bf16.mxu0 0
        %1643 = vmatmul.mubr.bf16.gmra.mrb[0].mxu0 %v1608
        %v1644 = vpop.f32.mrb[0].mxu0
        %v1645 = vadd.f32 %v1593, %v1644
        %v1646 = vpop.f32.mrb[0].mxu0
        %v1647 = vpop.f32.mrb[0].mxu0
        %v1648 = vpop.f32.mrb[0].mxu0
        %1649 = vdwg.mxu0
        %v1650 = vadd.f32 %v435, %v1645
        %1651 = vst.msk [vmem:[%s433] sm:$0xff] %vm440, %v1650
        %s1652 = sand.u32 %s217, 1
        %s1653 = scalar_lea.sflag [#allocation4], %s1652
        %s1654 = sand.u32 %s217, 1
        %s1655 = smul.addr %s1654, 8
        %s1656 = scalar_lea.vmem [#allocation16], %s1655
        // Predicated region
        $region85: #{tpu_custom_call.1} parent=51 // pred_check
          %p1657 = pneg %p227
        $region86: #{tpu_custom_call.1} parent=51 // pred_check_branch
          %1659 = sbr.rel (%p1657) target = $region88
        $region87: #{tpu_custom_call.1} parent=51 // pred_region
          %s1661 = ssub.s32 128, 128
          %1662 = vsyncadd %s1653, %s1661
          %s1663 = smul.addr %s31, 128
          %s1664 = scalar_lea.hbm %s8, %s1663
          %s1666 = sshll.u32 %s1656, 4
          %s1667 = int_to_ptr.vmem [resolvable:$true] %s1666
          %1669 = dma.vmem_to_hbm [thread:$0]  %s1667, 128, %s1664, %s1653
        $region88: #{tpu_custom_call.1} parent=51 // pred_fallthru
          _
      $region52: #{tpu_custom_call.1} parent=5 // pred_fallthru
        _
      %p1670 = scmp.le.s32.totalorder 2, %s26
      // Predicated region
      $region89: #{tpu_custom_call.1} parent=5 // pred_check
        %p1671 = pneg %p1670
      $region90: #{tpu_custom_call.1} parent=5 // pred_check_branch
        %1673 = sbr.rel (%p1671) target = $region92
      $region91: #{tpu_custom_call.1} parent=5 // pred_region
        %s1674 = ssub.s32 %s26, 2
        // Predicated region
        $region93: #{tpu_custom_call.1} parent=91 // pred_check
          %p1675 = pneg %p233
        $region94: #{tpu_custom_call.1} parent=91 // pred_check_branch
          %1677 = sbr.rel (%p1675) target = $region96
        $region95: #{tpu_custom_call.1} parent=91 // pred_region
          %s1678 = sand.u32 %s218, 1
          %s1679 = scalar_lea.sflag [#allocation4], %s1678
          %s1680 = sand.u32 %s218, 1
          %s1681 = smul.addr %s1680, 8
          %s1682 = scalar_lea.vmem [#allocation16], %s1681
          %1683 = dma.done %s1679, 128
        $region96: #{tpu_custom_call.1} parent=91 // pred_fallthru
          _
      $region92: #{tpu_custom_call.1} parent=5 // pred_fallthru
        _
    $region6: #{tpu_custom_call.1} parent=1 // loop_footer
      %s30 = sadd.s32 1, %s26
    $region7: #{tpu_custom_call.1} parent=1 // loop_footer_branch
      %25 = sbr.rel target = $region3
    $region8: #{tpu_custom_call.1} parent=1 // loop_exit
      _
    %1684 = vsyncpa [#allocation3], 1
    %s1685 = scalar_lea.sflag [#allocation3], 1
    %1686 = vsyncpa %s1685, 1
    %1687 = vsyncpa [#allocation6], 1
    %s1688 = scalar_lea.sflag [#allocation6], 1
    %1689 = vsyncpa %s1688, 1
    %1690 = vsyncpa [#allocation9], 1
    %1691 = vsyncpa [#allocation12], 1
    %1692 = vsyncpa [#allocation15], 1
    %1693 = vsyncpa [#allocation4], 1
    %s1694 = scalar_lea.sflag [#allocation4], 1
    %1695 = vsyncpa %s1694, 1

</llo_original>
